<compile_context>
chip_gen: v5e
topology: v5e:2x2
jax: 0.10.0
libtpu: 0.0.40
codegen_flags: <defaults>
</compile_context>

<pallas_src>
import functools
import math

import jax
import jax.numpy as jnp
from jax.experimental import pallas as pl
from jax.experimental.pallas import tpu as pltpu


# ----------------------------- Pallas kernel ------------------------------
def fastformer_kernel(x_ref, g1_ref, be1_ref, wk_ref, bk_ref, wv_ref, bv_ref,
                      wkexp_ref, wo_ref, bo_ref, g2_ref, be2_ref,
                      w1a_ref, b1a_ref, w1b_ref, b1b_ref, w2_ref, b2_ref,
                      o_ref, *, d_model, block_b, seq_len, matmul_dtype):
    eps = 1e-5
    C = d_model
    M = block_b * seq_len

    # Collapse (block_b, N, C) -> (M, C): one big slab for matmuls / LN.
    x = x_ref[...].reshape(M, C).astype(jnp.float32)

    def layernorm(v, g, b):
        # Single-pass statistics: var = E[v^2] - mu^2 (one fewer reduce).
        mu = jnp.mean(v, axis=-1, keepdims=True)
        ms = jnp.mean(v * v, axis=-1, keepdims=True)
        var = ms - mu * mu
        return (v - mu) * jax.lax.rsqrt(var + eps) * g + b

    # --- attention branch --------------------------------------------------
    h = layernorm(x, g1_ref[0], be1_ref[0]).astype(matmul_dtype)
    # K / V projections only (Q / query_weights are dead code in the module).
    k = jnp.dot(h, wk_ref[...], preferred_element_type=jnp.float32) + bk_ref[0]
    v = jnp.dot(h, wv_ref[...], preferred_element_type=jnp.float32) + bv_ref[0]

    # Additive-attention key pooling: softmax over the sequence axis.
    # key_attn[b,h,n,d] = k[b,h,n,d] * key_weights[h,n] / scale; the flat K
    # layout is head-major (col = h*D + d) and 1/scale is folded into wkexp.
    k3 = k.reshape(block_b, seq_len, C)
    key_attn = k3 * wkexp_ref[...]
    key_attn = key_attn - jnp.max(key_attn, axis=1, keepdims=True)
    kw = jnp.exp(key_attn)
    denom = jnp.sum(kw, axis=1, keepdims=True)                     # (Bb,1,C)
    global_key = jnp.sum(kw * k3, axis=1, keepdims=True) / denom   # (Bb,1,C)

    out = (v.reshape(block_b, seq_len, C) * global_key).reshape(M, C)
    out = jnp.dot(out.astype(matmul_dtype), wo_ref[...],
                  preferred_element_type=jnp.float32) + bo_ref[0]
    hs = x + out                         # residual 1 (dropout = eval mode)

    # --- feed-forward branch (ReGLU) ----------------------------------------
    h2 = layernorm(hs, g2_ref[0], be2_ref[0]).astype(matmul_dtype)
    a = jnp.dot(h2, w1a_ref[...], preferred_element_type=jnp.float32) + b1a_ref[0]
    b = jnp.dot(h2, w1b_ref[...], preferred_element_type=jnp.float32) + b1b_ref[0]
    g = a * jnp.maximum(b, 0.0)
    ffo = jnp.dot(g.astype(matmul_dtype), w2_ref[...],
                  preferred_element_type=jnp.float32) + b2_ref[0]

    o_ref[...] = (hs + ffo).reshape(block_b, seq_len, C).astype(o_ref.dtype)


# ------------------------------- wrapper ----------------------------------
def _tpu_policy():
    """Per-generation blocking / VMEM policy."""
    try:
        kind = jax.devices()[0].device_kind.lower()
    except Exception:  # pragma: no cover - be robust on odd backends
        kind = ""
    if "v7" in kind:
        # 2 TensorCores, 64 MiB VMEM: need >=2 steps per core for overlap.
        return dict(target_rows=256, min_grid_steps=4, vmem_cap=56 << 20)
    if "v5" in kind:
        # 1 TC, 128 MiB VMEM, lowest HBM BW: big slabs, bf16 I/O matters most.
        return dict(target_rows=256, min_grid_steps=1, vmem_cap=96 << 20)
    # v6e / default: 1 TC, 128 MiB VMEM, 256x256 MXU -> push the M dimension.
    return dict(target_rows=512, min_grid_steps=1, vmem_cap=96 << 20)


def _choose_block_b(batch, seq_len, *, target_rows, min_grid_steps):
    """Sequences per grid step: fill the MXU M dimension, keep enough grid
    steps for per-core pipelining where the chip has >1 TensorCore."""
    cap = max(1, target_rows // max(seq_len, 1))
    if min_grid_steps > 1 and batch >= min_grid_steps:
        cap = min(cap, batch // min_grid_steps)
    cap = max(1, min(cap, batch))
    best = 1
    for d in range(1, cap + 1):
        if batch % d == 0:               # exact divisor -> no ragged last block
            best = d
    return best


def _const_spec(shape):
    """Grid-invariant block: single-buffered (double-buffering a constant
    block is wasted VMEM)."""
    index_map = lambda b: (0,) * len(shape)
    try:
        return pl.BlockSpec(shape, index_map, pipeline_mode=pl.Buffered(1))
    except TypeError:                    # older jax without pipeline_mode
        return pl.BlockSpec(shape, index_map)


def fastformer_layer(x, params, *, matmul_dtype=jnp.bfloat16, io_dtype=None,
                     block_b=None):
    B, N, C = x.shape
    H = params["num_heads"]
    assert C % H == 0
    D = C // H
    ff_dim = params["W1"].shape[0]
    assert ff_dim % 2 == 0
    ff_half = ff_dim // 2
    scale = math.sqrt(D)
    # The reference einsum 'bhnd,hn->bhnd' requires N == d_model.
    assert params["key_weights"].shape == (H, N), \
        "key_weights must be (n_heads, N) with N == d_model"

    policy = _tpu_policy()
    if block_b is None:
        block_b = _choose_block_b(B, N, target_rows=policy["target_rows"],
                                  min_grid_steps=policy["min_grid_steps"])
    assert B % block_b == 0
    grid_b = B // block_b

    if io_dtype is None:
        io_dtype = x.dtype
    x = x.astype(io_dtype)

    # Dead-code elimination + split fused matmuls (no in-kernel lane slices).
    wqkv_t = params["Wqkv"].T                                        # (C, 3C)
    wk_t = wqkv_t[:, C:2 * C].astype(matmul_dtype)                   # (C, C)
    wv_t = wqkv_t[:, 2 * C:].astype(matmul_dtype)                    # (C, C)
    bk = params["bqkv"][C:2 * C].reshape(1, -1).astype(jnp.float32)
    bv = params["bqkv"][2 * C:].reshape(1, -1).astype(jnp.float32)
    wo_t = params["Wo"].T.astype(matmul_dtype)                       # (C, C)
    w1_t = params["W1"].T                                            # (C, ff)
    w1a_t = w1_t[:, :ff_half].astype(matmul_dtype)                   # (C, ff/2)
    w1b_t = w1_t[:, ff_half:].astype(matmul_dtype)                   # (C, ff/2)
    b1a = params["b1"][:ff_half].reshape(1, -1).astype(jnp.float32)
    b1b = params["b1"][ff_half:].reshape(1, -1).astype(jnp.float32)
    w2_t = params["W2"].T.astype(matmul_dtype)                       # (ff/2, C)
    # wk_exp[n, h*D + d] = key_weights[h, n] / scale  (head-major flat K cols)
    wk_exp = (jnp.repeat(params["key_weights"], D, axis=0).T
              / scale).astype(jnp.float32)                           # (N, C)

    row = lambda a: a.reshape(1, -1).astype(jnp.float32)
    args = (
        x,
        row(params["g1"]), row(params["be1"]),
        wk_t, bk, wv_t, bv,
        wk_exp,
        wo_t, row(params["bo"]),
        row(params["g2"]), row(params["be2"]),
        w1a_t, b1a, w1b_t, b1b,
        w2_t, row(params["b2"]),
    )

    in_specs = [pl.BlockSpec((block_b, N, C), lambda b: (b, 0, 0))] + \
               [_const_spec(a.shape) for a in args[1:]]

    # --- VMEM budget: 2x double-buffered x/out + single-buffered weights +
    #     live f32 intermediates (k, v, ff halves, h/hs/h2/out slabs).
    mm_bytes = jnp.dtype(matmul_dtype).itemsize
    io_bytes = jnp.dtype(io_dtype).itemsize
    M = block_b * N
    weight_bytes = sum(int(a.size) * (mm_bytes if a.dtype == matmul_dtype else 4)
                       for a in args[1:])
    xblock_bytes = block_b * N * C * io_bytes
    interm_bytes = M * C * 4 * 6 + M * ff_half * 4 * 3
    vmem_est = 4 * xblock_bytes + weight_bytes + interm_bytes
    vmem_limit = int(min(max(2 * vmem_est, 32 << 20), policy["vmem_cap"]))

    # --- advisory cost estimate for XLA's scheduler.
    flops = 2 * B * N * C * (3 * C + 3 * ff_half)
    transcendentals = B * N * C + 2 * B * N        # softmax exp + 2x LN rsqrt
    bytes_accessed = int(x.size * io_bytes + B * N * C * io_bytes
                         + weight_bytes)
    cost = pl.CostEstimate(flops=int(flops), transcendentals=int(transcendentals),
                           bytes_accessed=bytes_accessed)

    kernel = functools.partial(
        fastformer_kernel, d_model=C, block_b=block_b, seq_len=N,
        matmul_dtype=matmul_dtype)

    return pl.pallas_call(
        kernel,
        out_shape=jax.ShapeDtypeStruct((B, N, C), io_dtype),
        grid_spec=pltpu.PrefetchScalarGridSpec(
            num_scalar_prefetch=0,
            grid=(grid_b,),
            in_specs=in_specs,
            out_specs=pl.BlockSpec((block_b, N, C), lambda b: (b, 0, 0)),
        ),
        compiler_params=pltpu.CompilerParams(
            dimension_semantics=("parallel",),
            vmem_limit_bytes=vmem_limit),
        cost_estimate=cost,
    )(*args)


# --------------------------- plain-JAX reference ---------------------------
def reference(x, params):
    B, N, C = x.shape
    H = params["num_heads"]
    D = C // H
    scale = math.sqrt(D)
    ff_dim = params["W1"].shape[0]

    def ln(v, g, b):
        mu = v.mean(-1, keepdims=True)
        var = ((v - mu) ** 2).mean(-1, keepdims=True)
        return (v - mu) / jnp.sqrt(var + 1e-5) * g + b

    h = ln(x, params["g1"], params["be1"])
    qkv = h @ params["Wqkv"].T + params["bqkv"]
    qkv = jnp.transpose(qkv.reshape(B, N, 3, H, D), (2, 0, 3, 1, 4))
    q, k, v = qkv[0], qkv[1], qkv[2]
    key_attn = jnp.einsum('bhnd,hn->bhnd', k, params["key_weights"]) / scale
    kw = jax.nn.softmax(key_attn, axis=2)
    gk = (kw * k).sum(axis=2, keepdims=True)
    out = v * gk
    out = jnp.transpose(out, (0, 2, 1, 3)).reshape(B, N, C)
    out = out @ params["Wo"].T + params["bo"]
    hs = x + out
    h2 = ln(hs, params["g2"], params["be2"])
    ff = h2 @ params["W1"].T + params["b1"]
    a, b = ff[..., :ff_dim // 2], ff[..., ff_dim // 2:]
    g = a * jnp.maximum(b, 0.0)
    ffo = g @ params["W2"].T + params["b2"]
    return hs + ffo


# --------------------------------- main ------------------------------------
if __name__ == "__main__":
    d_model, n_heads, ff_dim = 32, 4, 64
    B, N = 2, d_model          # N must equal d_model (see einsum note above)

    key = jax.random.PRNGKey(0)
    ks = jax.random.split(key, 12)

    def xavier(k, shape):
        limit = math.sqrt(6.0 / (shape[0] + shape[1]))
        return jax.random.uniform(k, shape, jnp.float32, -limit, limit)

    params = {
        "num_heads": n_heads,
        "Wqkv": xavier(ks[0], (3 * d_model, d_model)),
        "bqkv": 0.01 * jax.random.normal(ks[1], (3 * d_model,), jnp.float32),
        "Wo": xavier(ks[2], (d_model, d_model)),
        "bo": 0.01 * jax.random.normal(ks[3], (d_model,), jnp.float32),
        "key_weights": xavier(ks[4], (n_heads, d_model)),
        "g1": jnp.ones((d_model,), jnp.float32),
        "be1": jnp.zeros((d_model,), jnp.float32),
        "g2": jnp.ones((d_model,), jnp.float32),
        "be2": jnp.zeros((d_model,), jnp.float32),
        "W1": xavier(ks[5], (ff_dim, d_model)),
        "b1": 0.01 * jax.random.normal(ks[6], (ff_dim,), jnp.float32),
        "W2": xavier(ks[7], (d_model, ff_dim // 2)),
        "b2": 0.01 * jax.random.normal(ks[8], (d_model,), jnp.float32),
    }

    x = jax.random.normal(ks[9], (B, N, d_model), jnp.float32)
    ref = reference(x, params)

    # 1) f32 matmul operands + f32 I/O: strict check of the fused algorithm.
    out_f32 = jax.block_until_ready(
        fastformer_layer(x, params, matmul_dtype=jnp.float32))
    assert out_f32.shape == (B, N, d_model)
    assert jnp.allclose(out_f32, ref, atol=1e-2, rtol=1e-2), \
        f"f32 max diff {jnp.max(jnp.abs(out_f32 - ref))}"

    # 2) bf16 matmul operands (recommended on v6e/v7x), f32 accumulation/IO.
    out_bf16 = jax.block_until_ready(
        fastformer_layer(x, params, matmul_dtype=jnp.bfloat16))
    assert jnp.allclose(out_bf16, ref, atol=8e-2, rtol=5e-2), \
        f"bf16 max diff {jnp.max(jnp.abs(out_bf16 - ref))}"

    # 3) bf16 I/O (halves per-step HBM traffic), f32 math inside the kernel.
    out_bf16io = jax.block_until_ready(
        fastformer_layer(x, params, matmul_dtype=jnp.bfloat16,
                         io_dtype=jnp.bfloat16))
    assert out_bf16io.dtype == jnp.bfloat16
    assert jnp.allclose(out_bf16io.astype(jnp.float32), ref,
                        atol=2e-1, rtol=1e-1), \
        f"bf16-io max diff {jnp.max(jnp.abs(out_bf16io.astype(jnp.float32) - ref))}"

    # 4) Larger batch: exercises multi-sequence-per-grid-step blocking.
    B2 = 8
    x2 = jax.random.normal(ks[10], (B2, N, d_model), jnp.float32)
    ref2 = reference(x2, params)
    out2 = jax.block_until_ready(
        fastformer_layer(x2, params, matmul_dtype=jnp.float32))
    assert out2.shape == (B2, N, d_model)
    assert jnp.allclose(out2, ref2, atol=1e-2, rtol=1e-2), \
        f"blocked max diff {jnp.max(jnp.abs(out2 - ref2))}"

    print("KERNEL_OK")
</pallas_src>

<mosaic_0001>
module attributes {stable_mosaic.version = 11 : i64} {
  func.func @fastformer_kernel(%arg0: i32, %arg1: memref<2x32x32xf32, #tpu.memory_space<vmem>>, %arg2: memref<1x32xf32, #tpu.memory_space<vmem>>, %arg3: memref<1x32xf32, #tpu.memory_space<vmem>>, %arg4: memref<32x32xf32, #tpu.memory_space<vmem>>, %arg5: memref<1x32xf32, #tpu.memory_space<vmem>>, %arg6: memref<32x32xf32, #tpu.memory_space<vmem>>, %arg7: memref<1x32xf32, #tpu.memory_space<vmem>>, %arg8: memref<32x32xf32, #tpu.memory_space<vmem>>, %arg9: memref<32x32xf32, #tpu.memory_space<vmem>>, %arg10: memref<1x32xf32, #tpu.memory_space<vmem>>, %arg11: memref<1x32xf32, #tpu.memory_space<vmem>>, %arg12: memref<1x32xf32, #tpu.memory_space<vmem>>, %arg13: memref<32x32xf32, #tpu.memory_space<vmem>>, %arg14: memref<1x32xf32, #tpu.memory_space<vmem>>, %arg15: memref<32x32xf32, #tpu.memory_space<vmem>>, %arg16: memref<1x32xf32, #tpu.memory_space<vmem>>, %arg17: memref<32x32xf32, #tpu.memory_space<vmem>>, %arg18: memref<1x32xf32, #tpu.memory_space<vmem>>, %arg19: memref<2x32x32xf32, #tpu.memory_space<vmem>>) attributes {dimension_semantics = [#tpu.dimension_semantics<parallel>], iteration_bounds = array<i64: 1>, scalar_prefetch = 0 : i64, scratch_operands = 0 : i64, tpu.core_type = #tpu.core_type<tc>, window_params = [{transform_indices = @transform_0, window_bounds = array<i64: 2, 32, 32>}, {pipeline_mode = #tpu.pipeline_mode<synchronous>, transform_indices = @transform_1, window_bounds = array<i64: 1, 32>}, {pipeline_mode = #tpu.pipeline_mode<synchronous>, transform_indices = @transform_2, window_bounds = array<i64: 1, 32>}, {pipeline_mode = #tpu.pipeline_mode<synchronous>, transform_indices = @transform_3, window_bounds = array<i64: 32, 32>}, {pipeline_mode = #tpu.pipeline_mode<synchronous>, transform_indices = @transform_4, window_bounds = array<i64: 1, 32>}, {pipeline_mode = #tpu.pipeline_mode<synchronous>, transform_indices = @transform_5, window_bounds = array<i64: 32, 32>}, {pipeline_mode = #tpu.pipeline_mode<synchronous>, transform_indices = @transform_6, window_bounds = array<i64: 1, 32>}, {pipeline_mode = #tpu.pipeline_mode<synchronous>, transform_indices = @transform_7, window_bounds = array<i64: 32, 32>}, {pipeline_mode = #tpu.pipeline_mode<synchronous>, transform_indices = @transform_8, window_bounds = array<i64: 32, 32>}, {pipeline_mode = #tpu.pipeline_mode<synchronous>, transform_indices = @transform_9, window_bounds = array<i64: 1, 32>}, {pipeline_mode = #tpu.pipeline_mode<synchronous>, transform_indices = @transform_10, window_bounds = array<i64: 1, 32>}, {pipeline_mode = #tpu.pipeline_mode<synchronous>, transform_indices = @transform_11, window_bounds = array<i64: 1, 32>}, {pipeline_mode = #tpu.pipeline_mode<synchronous>, transform_indices = @transform_12, window_bounds = array<i64: 32, 32>}, {pipeline_mode = #tpu.pipeline_mode<synchronous>, transform_indices = @transform_13, window_bounds = array<i64: 1, 32>}, {pipeline_mode = #tpu.pipeline_mode<synchronous>, transform_indices = @transform_14, window_bounds = array<i64: 32, 32>}, {pipeline_mode = #tpu.pipeline_mode<synchronous>, transform_indices = @transform_15, window_bounds = array<i64: 1, 32>}, {pipeline_mode = #tpu.pipeline_mode<synchronous>, transform_indices = @transform_16, window_bounds = array<i64: 32, 32>}, {pipeline_mode = #tpu.pipeline_mode<synchronous>, transform_indices = @transform_17, window_bounds = array<i64: 1, 32>}, {transform_indices = @transform_18, window_bounds = array<i64: 2, 32, 32>}]} {
    %c0 = arith.constant 0 : index
    %c0_0 = arith.constant 0 : index
    %c0_1 = arith.constant 0 : index
    %0 = vector.load %arg1[%c0, %c0_0, %c0_1] : memref<2x32x32xf32, #tpu.memory_space<vmem>>, vector<2x32x32xf32>
    %1 = vector.shape_cast %0 : vector<2x32x32xf32> to vector<64x32xf32>
    %c0_2 = arith.constant 0 : index
    %c0_3 = arith.constant 0 : index
    %2 = vector.load %arg2[%c0_2, %c0_3] : memref<1x32xf32, #tpu.memory_space<vmem>>, vector<1x32xf32>
    %3 = vector.shape_cast %2 : vector<1x32xf32> to vector<32xf32>
    %c0_4 = arith.constant 0 : index
    %c0_5 = arith.constant 0 : index
    %4 = vector.load %arg3[%c0_4, %c0_5] : memref<1x32xf32, #tpu.memory_space<vmem>>, vector<1x32xf32>
    %5 = vector.shape_cast %4 : vector<1x32xf32> to vector<32xf32>
    %cst = arith.constant dense<0.000000e+00> : vector<64xf32>
    %6 = vector.multi_reduction <add>, %1, %cst [1] : vector<64x32xf32> to vector<64xf32>
    %7 = vector.shape_cast %6 : vector<64xf32> to vector<64x1xf32>
    %cst_6 = arith.constant 3.200000e+01 : f32
    %8 = vector.broadcast %cst_6 : f32 to vector<64x1xf32>
    %9 = arith.divf %7, %8 : vector<64x1xf32>
    %10 = arith.mulf %1, %1 : vector<64x32xf32>
    %cst_7 = arith.constant dense<0.000000e+00> : vector<64xf32>
    %11 = vector.multi_reduction <add>, %10, %cst_7 [1] : vector<64x32xf32> to vector<64xf32>
    %12 = vector.shape_cast %11 : vector<64xf32> to vector<64x1xf32>
    %cst_8 = arith.constant 3.200000e+01 : f32
    %13 = vector.broadcast %cst_8 : f32 to vector<64x1xf32>
    %14 = arith.divf %12, %13 : vector<64x1xf32>
    %15 = arith.mulf %9, %9 : vector<64x1xf32>
    %16 = arith.subf %14, %15 : vector<64x1xf32>
    %17 = vector.broadcast %9 : vector<64x1xf32> to vector<64x32xf32>
    %18 = arith.subf %1, %17 : vector<64x32xf32>
    %cst_9 = arith.constant 9.99999974E-6 : f32
    %19 = vector.broadcast %cst_9 : f32 to vector<64x1xf32>
    %20 = arith.addf %16, %19 : vector<64x1xf32>
    %21 = math.rsqrt %20 : vector<64x1xf32>
    %22 = vector.broadcast %21 : vector<64x1xf32> to vector<64x32xf32>
    %23 = arith.mulf %18, %22 : vector<64x32xf32>
    %24 = vector.shape_cast %3 : vector<32xf32> to vector<1x32xf32>
    %25 = vector.broadcast %24 : vector<1x32xf32> to vector<64x32xf32>
    %26 = arith.mulf %23, %25 : vector<64x32xf32>
    %27 = vector.shape_cast %5 : vector<32xf32> to vector<1x32xf32>
    %28 = vector.broadcast %27 : vector<1x32xf32> to vector<64x32xf32>
    %29 = arith.addf %26, %28 : vector<64x32xf32>
    %c0_10 = arith.constant 0 : index
    %c0_11 = arith.constant 0 : index
    %30 = vector.load %arg4[%c0_10, %c0_11] : memref<32x32xf32, #tpu.memory_space<vmem>>, vector<32x32xf32>
    %cst_12 = arith.constant dense<0.000000e+00> : vector<64x32xf32>
    %31 = tpu.matmul %29, %30, %cst_12 {dimension_numbers = #tpu.dot_dimension_numbers<[1], [0], [0], [1], [0, 0, 1, 1], [], []>} : vector<64x32xf32>, vector<32x32xf32>, vector<64x32xf32> -> vector<64x32xf32>
    %c0_13 = arith.constant 0 : index
    %c0_14 = arith.constant 0 : index
    %32 = vector.load %arg5[%c0_13, %c0_14] : memref<1x32xf32, #tpu.memory_space<vmem>>, vector<1x32xf32>
    %33 = vector.shape_cast %32 : vector<1x32xf32> to vector<32xf32>
    %34 = vector.shape_cast %33 : vector<32xf32> to vector<1x32xf32>
    %35 = vector.broadcast %34 : vector<1x32xf32> to vector<64x32xf32>
    %36 = arith.addf %31, %35 : vector<64x32xf32>
    %c0_15 = arith.constant 0 : index
    %c0_16 = arith.constant 0 : index
    %37 = vector.load %arg6[%c0_15, %c0_16] : memref<32x32xf32, #tpu.memory_space<vmem>>, vector<32x32xf32>
    %cst_17 = arith.constant dense<0.000000e+00> : vector<64x32xf32>
    %38 = tpu.matmul %29, %37, %cst_17 {dimension_numbers = #tpu.dot_dimension_numbers<[1], [0], [0], [1], [0, 0, 1, 1], [], []>} : vector<64x32xf32>, vector<32x32xf32>, vector<64x32xf32> -> vector<64x32xf32>
    %c0_18 = arith.constant 0 : index
    %c0_19 = arith.constant 0 : index
    %39 = vector.load %arg7[%c0_18, %c0_19] : memref<1x32xf32, #tpu.memory_space<vmem>>, vector<1x32xf32>
    %40 = vector.shape_cast %39 : vector<1x32xf32> to vector<32xf32>
    %41 = vector.shape_cast %40 : vector<32xf32> to vector<1x32xf32>
    %42 = vector.broadcast %41 : vector<1x32xf32> to vector<64x32xf32>
    %43 = arith.addf %38, %42 : vector<64x32xf32>
    %44 = vector.shape_cast %36 : vector<64x32xf32> to vector<2x32x32xf32>
    %c0_20 = arith.constant 0 : index
    %c0_21 = arith.constant 0 : index
    %45 = vector.load %arg8[%c0_20, %c0_21] : memref<32x32xf32, #tpu.memory_space<vmem>>, vector<32x32xf32>
    %46 = vector.shape_cast %45 : vector<32x32xf32> to vector<1x32x32xf32>
    %47 = vector.broadcast %46 : vector<1x32x32xf32> to vector<2x32x32xf32>
    %48 = arith.mulf %44, %47 : vector<2x32x32xf32>
    %cst_22 = arith.constant dense<0xFF800000> : vector<2x32xf32>
    %49 = vector.multi_reduction <maximumf>, %48, %cst_22 [1] : vector<2x32x32xf32> to vector<2x32xf32>
    %50 = vector.shape_cast %49 : vector<2x32xf32> to vector<2x1x32xf32>
    %51 = vector.broadcast %50 : vector<2x1x32xf32> to vector<2x32x32xf32>
    %52 = arith.subf %48, %51 : vector<2x32x32xf32>
    %53 = math.exp %52 : vector<2x32x32xf32>
    %cst_23 = arith.constant dense<0.000000e+00> : vector<2x32xf32>
    %54 = vector.multi_reduction <add>, %53, %cst_23 [1] : vector<2x32x32xf32> to vector<2x32xf32>
    %55 = vector.shape_cast %54 : vector<2x32xf32> to vector<2x1x32xf32>
    %56 = arith.mulf %53, %44 : vector<2x32x32xf32>
    %cst_24 = arith.constant dense<0.000000e+00> : vector<2x32xf32>
    %57 = vector.multi_reduction <add>, %56, %cst_24 [1] : vector<2x32x32xf32> to vector<2x32xf32>
    %58 = vector.shape_cast %57 : vector<2x32xf32> to vector<2x1x32xf32>
    %59 = arith.divf %58, %55 : vector<2x1x32xf32>
    %60 = vector.shape_cast %43 : vector<64x32xf32> to vector<2x32x32xf32>
    %61 = vector.broadcast %59 : vector<2x1x32xf32> to vector<2x32x32xf32>
    %62 = arith.mulf %60, %61 : vector<2x32x32xf32>
    %63 = vector.shape_cast %62 : vector<2x32x32xf32> to vector<64x32xf32>
    %c0_25 = arith.constant 0 : index
    %c0_26 = arith.constant 0 : index
    %64 = vector.load %arg9[%c0_25, %c0_26] : memref<32x32xf32, #tpu.memory_space<vmem>>, vector<32x32xf32>
    %cst_27 = arith.constant dense<0.000000e+00> : vector<64x32xf32>
    %65 = tpu.matmul %63, %64, %cst_27 {dimension_numbers = #tpu.dot_dimension_numbers<[1], [0], [0], [1], [0, 0, 1, 1], [], []>} : vector<64x32xf32>, vector<32x32xf32>, vector<64x32xf32> -> vector<64x32xf32>
    %c0_28 = arith.constant 0 : index
    %c0_29 = arith.constant 0 : index
    %66 = vector.load %arg10[%c0_28, %c0_29] : memref<1x32xf32, #tpu.memory_space<vmem>>, vector<1x32xf32>
    %67 = vector.shape_cast %66 : vector<1x32xf32> to vector<32xf32>
    %68 = vector.shape_cast %67 : vector<32xf32> to vector<1x32xf32>
    %69 = vector.broadcast %68 : vector<1x32xf32> to vector<64x32xf32>
    %70 = arith.addf %65, %69 : vector<64x32xf32>
    %71 = arith.addf %1, %70 : vector<64x32xf32>
    %c0_30 = arith.constant 0 : index
    %c0_31 = arith.constant 0 : index
    %72 = vector.load %arg11[%c0_30, %c0_31] : memref<1x32xf32, #tpu.memory_space<vmem>>, vector<1x32xf32>
    %73 = vector.shape_cast %72 : vector<1x32xf32> to vector<32xf32>
    %c0_32 = arith.constant 0 : index
    %c0_33 = arith.constant 0 : index
    %74 = vector.load %arg12[%c0_32, %c0_33] : memref<1x32xf32, #tpu.memory_space<vmem>>, vector<1x32xf32>
    %75 = vector.shape_cast %74 : vector<1x32xf32> to vector<32xf32>
    %cst_34 = arith.constant dense<0.000000e+00> : vector<64xf32>
    %76 = vector.multi_reduction <add>, %71, %cst_34 [1] : vector<64x32xf32> to vector<64xf32>
    %77 = vector.shape_cast %76 : vector<64xf32> to vector<64x1xf32>
    %cst_35 = arith.constant 3.200000e+01 : f32
    %78 = vector.broadcast %cst_35 : f32 to vector<64x1xf32>
    %79 = arith.divf %77, %78 : vector<64x1xf32>
    %80 = arith.mulf %71, %71 : vector<64x32xf32>
    %cst_36 = arith.constant dense<0.000000e+00> : vector<64xf32>
    %81 = vector.multi_reduction <add>, %80, %cst_36 [1] : vector<64x32xf32> to vector<64xf32>
    %82 = vector.shape_cast %81 : vector<64xf32> to vector<64x1xf32>
    %cst_37 = arith.constant 3.200000e+01 : f32
    %83 = vector.broadcast %cst_37 : f32 to vector<64x1xf32>
    %84 = arith.divf %82, %83 : vector<64x1xf32>
    %85 = arith.mulf %79, %79 : vector<64x1xf32>
    %86 = arith.subf %84, %85 : vector<64x1xf32>
    %87 = vector.broadcast %79 : vector<64x1xf32> to vector<64x32xf32>
    %88 = arith.subf %71, %87 : vector<64x32xf32>
    %cst_38 = arith.constant 9.99999974E-6 : f32
    %89 = vector.broadcast %cst_38 : f32 to vector<64x1xf32>
    %90 = arith.addf %86, %89 : vector<64x1xf32>
    %91 = math.rsqrt %90 : vector<64x1xf32>
    %92 = vector.broadcast %91 : vector<64x1xf32> to vector<64x32xf32>
    %93 = arith.mulf %88, %92 : vector<64x32xf32>
    %94 = vector.shape_cast %73 : vector<32xf32> to vector<1x32xf32>
    %95 = vector.broadcast %94 : vector<1x32xf32> to vector<64x32xf32>
    %96 = arith.mulf %93, %95 : vector<64x32xf32>
    %97 = vector.shape_cast %75 : vector<32xf32> to vector<1x32xf32>
    %98 = vector.broadcast %97 : vector<1x32xf32> to vector<64x32xf32>
    %99 = arith.addf %96, %98 : vector<64x32xf32>
    %c0_39 = arith.constant 0 : index
    %c0_40 = arith.constant 0 : index
    %100 = vector.load %arg13[%c0_39, %c0_40] : memref<32x32xf32, #tpu.memory_space<vmem>>, vector<32x32xf32>
    %cst_41 = arith.constant dense<0.000000e+00> : vector<64x32xf32>
    %101 = tpu.matmul %99, %100, %cst_41 {dimension_numbers = #tpu.dot_dimension_numbers<[1], [0], [0], [1], [0, 0, 1, 1], [], []>} : vector<64x32xf32>, vector<32x32xf32>, vector<64x32xf32> -> vector<64x32xf32>
    %c0_42 = arith.constant 0 : index
    %c0_43 = arith.constant 0 : index
    %102 = vector.load %arg14[%c0_42, %c0_43] : memref<1x32xf32, #tpu.memory_space<vmem>>, vector<1x32xf32>
    %103 = vector.shape_cast %102 : vector<1x32xf32> to vector<32xf32>
    %104 = vector.shape_cast %103 : vector<32xf32> to vector<1x32xf32>
    %105 = vector.broadcast %104 : vector<1x32xf32> to vector<64x32xf32>
    %106 = arith.addf %101, %105 : vector<64x32xf32>
    %c0_44 = arith.constant 0 : index
    %c0_45 = arith.constant 0 : index
    %107 = vector.load %arg15[%c0_44, %c0_45] : memref<32x32xf32, #tpu.memory_space<vmem>>, vector<32x32xf32>
    %cst_46 = arith.constant dense<0.000000e+00> : vector<64x32xf32>
    %108 = tpu.matmul %99, %107, %cst_46 {dimension_numbers = #tpu.dot_dimension_numbers<[1], [0], [0], [1], [0, 0, 1, 1], [], []>} : vector<64x32xf32>, vector<32x32xf32>, vector<64x32xf32> -> vector<64x32xf32>
    %c0_47 = arith.constant 0 : index
    %c0_48 = arith.constant 0 : index
    %109 = vector.load %arg16[%c0_47, %c0_48] : memref<1x32xf32, #tpu.memory_space<vmem>>, vector<1x32xf32>
    %110 = vector.shape_cast %109 : vector<1x32xf32> to vector<32xf32>
    %111 = vector.shape_cast %110 : vector<32xf32> to vector<1x32xf32>
    %112 = vector.broadcast %111 : vector<1x32xf32> to vector<64x32xf32>
    %113 = arith.addf %108, %112 : vector<64x32xf32>
    %cst_49 = arith.constant 0.000000e+00 : f32
    %114 = vector.broadcast %cst_49 : f32 to vector<64x32xf32>
    %115 = arith.maximumf %113, %114 : vector<64x32xf32>
    %116 = arith.mulf %106, %115 : vector<64x32xf32>
    %c0_50 = arith.constant 0 : index
    %c0_51 = arith.constant 0 : index
    %117 = vector.load %arg17[%c0_50, %c0_51] : memref<32x32xf32, #tpu.memory_space<vmem>>, vector<32x32xf32>
    %cst_52 = arith.constant dense<0.000000e+00> : vector<64x32xf32>
    %118 = tpu.matmul %116, %117, %cst_52 {dimension_numbers = #tpu.dot_dimension_numbers<[1], [0], [0], [1], [0, 0, 1, 1], [], []>} : vector<64x32xf32>, vector<32x32xf32>, vector<64x32xf32> -> vector<64x32xf32>
    %c0_53 = arith.constant 0 : index
    %c0_54 = arith.constant 0 : index
    %119 = vector.load %arg18[%c0_53, %c0_54] : memref<1x32xf32, #tpu.memory_space<vmem>>, vector<1x32xf32>
    %120 = vector.shape_cast %119 : vector<1x32xf32> to vector<32xf32>
    %121 = vector.shape_cast %120 : vector<32xf32> to vector<1x32xf32>
    %122 = vector.broadcast %121 : vector<1x32xf32> to vector<64x32xf32>
    %123 = arith.addf %118, %122 : vector<64x32xf32>
    %124 = arith.addf %71, %123 : vector<64x32xf32>
    %125 = vector.shape_cast %124 : vector<64x32xf32> to vector<2x32x32xf32>
    %c0_55 = arith.constant 0 : index
    %c0_56 = arith.constant 0 : index
    %c0_57 = arith.constant 0 : index
    %126 = vector.load %arg19[%c0_55, %c0_56, %c0_57] : memref<2x32x32xf32, #tpu.memory_space<vmem>>, vector<2x32x32xf32>
    tpu.vector_store %arg19[%c0_55, %c0_56, %c0_57], %125 {strides = array<i32>} : memref<2x32x32xf32, #tpu.memory_space<vmem>>, vector<2x32x32xf32>,
    return
  }
  func.func @transform_0(%arg0: i32) -> (i32, i32, i32) {
    %c0_i32 = arith.constant 0 : i32
    %c0_i32_0 = arith.constant 0 : i32
    %c0_i32_1 = arith.constant 0 : i32
    return %arg0, %c0_i32, %c0_i32_0 : i32, i32, i32
  }
  func.func @transform_1(%arg0: i32) -> (i32, i32) {
    %c0_i32 = arith.constant 0 : i32
    %c0_i32_0 = arith.constant 0 : i32
    %c0_i32_1 = arith.constant 0 : i32
    return %c0_i32, %c0_i32_0 : i32, i32
  }
  func.func @transform_2(%arg0: i32) -> (i32, i32) {
    %c0_i32 = arith.constant 0 : i32
    %c0_i32_0 = arith.constant 0 : i32
    %c0_i32_1 = arith.constant 0 : i32
    return %c0_i32, %c0_i32_0 : i32, i32
  }
  func.func @transform_3(%arg0: i32) -> (i32, i32) {
    %c0_i32 = arith.constant 0 : i32
    %c0_i32_0 = arith.constant 0 : i32
    %c0_i32_1 = arith.constant 0 : i32
    return %c0_i32, %c0_i32_0 : i32, i32
  }
  func.func @transform_4(%arg0: i32) -> (i32, i32) {
    %c0_i32 = arith.constant 0 : i32
    %c0_i32_0 = arith.constant 0 : i32
    %c0_i32_1 = arith.constant 0 : i32
    return %c0_i32, %c0_i32_0 : i32, i32
  }
  func.func @transform_5(%arg0: i32) -> (i32, i32) {
    %c0_i32 = arith.constant 0 : i32
    %c0_i32_0 = arith.constant 0 : i32
    %c0_i32_1 = arith.constant 0 : i32
    return %c0_i32, %c0_i32_0 : i32, i32
  }
  func.func @transform_6(%arg0: i32) -> (i32, i32) {
    %c0_i32 = arith.constant 0 : i32
    %c0_i32_0 = arith.constant 0 : i32
    %c0_i32_1 = arith.constant 0 : i32
    return %c0_i32, %c0_i32_0 : i32, i32
  }
  func.func @transform_7(%arg0: i32) -> (i32, i32) {
    %c0_i32 = arith.constant 0 : i32
    %c0_i32_0 = arith.constant 0 : i32
    %c0_i32_1 = arith.constant 0 : i32
    return %c0_i32, %c0_i32_0 : i32, i32
  }
  func.func @transform_8(%arg0: i32) -> (i32, i32) {
    %c0_i32 = arith.constant 0 : i32
    %c0_i32_0 = arith.constant 0 : i32
    %c0_i32_1 = arith.constant 0 : i32
    return %c0_i32, %c0_i32_0 : i32, i32
  }
  func.func @transform_9(%arg0: i32) -> (i32, i32) {
    %c0_i32 = arith.constant 0 : i32
    %c0_i32_0 = arith.constant 0 : i32
    %c0_i32_1 = arith.constant 0 : i32
    return %c0_i32, %c0_i32_0 : i32, i32
  }
  func.func @transform_10(%arg0: i32) -> (i32, i32) {
    %c0_i32 = arith.constant 0 : i32
    %c0_i32_0 = arith.constant 0 : i32
    %c0_i32_1 = arith.constant 0 : i32
    return %c0_i32, %c0_i32_0 : i32, i32
  }
  func.func @transform_11(%arg0: i32) -> (i32, i32) {
    %c0_i32 = arith.constant 0 : i32
    %c0_i32_0 = arith.constant 0 : i32
    %c0_i32_1 = arith.constant 0 : i32
    return %c0_i32, %c0_i32_0 : i32, i32
  }
  func.func @transform_12(%arg0: i32) -> (i32, i32) {
    %c0_i32 = arith.constant 0 : i32
    %c0_i32_0 = arith.constant 0 : i32
    %c0_i32_1 = arith.constant 0 : i32
    return %c0_i32, %c0_i32_0 : i32, i32
  }
  func.func @transform_13(%arg0: i32) -> (i32, i32) {
    %c0_i32 = arith.constant 0 : i32
    %c0_i32_0 = arith.constant 0 : i32
    %c0_i32_1 = arith.constant 0 : i32
    return %c0_i32, %c0_i32_0 : i32, i32
  }
  func.func @transform_14(%arg0: i32) -> (i32, i32) {
    %c0_i32 = arith.constant 0 : i32
    %c0_i32_0 = arith.constant 0 : i32
    %c0_i32_1 = arith.constant 0 : i32
    return %c0_i32, %c0_i32_0 : i32, i32
  }
  func.func @transform_15(%arg0: i32) -> (i32, i32) {
    %c0_i32 = arith.constant 0 : i32
    %c0_i32_0 = arith.constant 0 : i32
    %c0_i32_1 = arith.constant 0 : i32
    return %c0_i32, %c0_i32_0 : i32, i32
  }
  func.func @transform_16(%arg0: i32) -> (i32, i32) {
    %c0_i32 = arith.constant 0 : i32
    %c0_i32_0 = arith.constant 0 : i32
    %c0_i32_1 = arith.constant 0 : i32
    return %c0_i32, %c0_i32_0 : i32, i32
  }
  func.func @transform_17(%arg0: i32) -> (i32, i32) {
    %c0_i32 = arith.constant 0 : i32
    %c0_i32_0 = arith.constant 0 : i32
    %c0_i32_1 = arith.constant 0 : i32
    return %c0_i32, %c0_i32_0 : i32, i32
  }
  func.func @transform_18(%arg0: i32) -> (i32, i32, i32) {
    %c0_i32 = arith.constant 0 : i32
    %c0_i32_0 = arith.constant 0 : i32
    %c0_i32_1 = arith.constant 0 : i32
    return %arg0, %c0_i32, %c0_i32_0 : i32, i32, i32
  }
}

</mosaic_0001>

<llo_original>
// kernel: tpu_custom_call.1
$region0: #{tpu_custom_call.1}
  #allocation0 [shape = 'u32[]', space=smem, size = 0x4, offset = 0x4, fixed_abs, tag = 'smem constant byte address 0x4 - core index']
  #allocation1 [shape = 'u32[72,128]{1,0:T(1,128)}', space=vmem, size = 0x9000, scoped, tag = 'internal scratch']
  %s0 = inlined_call_operand.hbm [shape: f32[2,32,32], index: 0, kind: input, shape index: {}]
  %s1 = inlined_call_operand.hbm [shape: f32[1,32], index: 1, kind: input, shape index: {}]
  %s2 = inlined_call_operand.vmem [shape: f32[1,32], index: 2, kind: input, shape index: {}]
  %s3 = inlined_call_operand.hbm [shape: f32[32,32], index: 3, kind: input, shape index: {}]
  %s4 = inlined_call_operand.vmem [shape: f32[1,32], index: 4, kind: input, shape index: {}]
  %s5 = inlined_call_operand.hbm [shape: f32[32,32], index: 5, kind: input, shape index: {}]
  %s6 = inlined_call_operand.vmem [shape: f32[1,32], index: 6, kind: input, shape index: {}]
  %s7 = inlined_call_operand.hbm [shape: f32[32,32], index: 7, kind: input, shape index: {}]
  %s8 = inlined_call_operand.hbm [shape: f32[32,32], index: 8, kind: input, shape index: {}]
  %s9 = inlined_call_operand.vmem [shape: f32[1,32], index: 9, kind: input, shape index: {}]
  %s10 = inlined_call_operand.vmem [shape: f32[1,32], index: 10, kind: input, shape index: {}]
  %s11 = inlined_call_operand.vmem [shape: f32[1,32], index: 11, kind: input, shape index: {}]
  %s12 = inlined_call_operand.hbm [shape: f32[32,32], index: 12, kind: input, shape index: {}]
  %s13 = inlined_call_operand.vmem [shape: f32[1,32], index: 13, kind: input, shape index: {}]
  %s14 = inlined_call_operand.hbm [shape: f32[32,32], index: 14, kind: input, shape index: {}]
  %s15 = inlined_call_operand.vmem [shape: f32[1,32], index: 15, kind: input, shape index: {}]
  %s16 = inlined_call_operand.hbm [shape: f32[32,32], index: 16, kind: input, shape index: {}]
  %s17 = inlined_call_operand.vmem [shape: f32[1,32], index: 17, kind: input, shape index: {}]
  %s18 = inlined_call_operand.hbm [shape: f32[2,32,32], index: 18, kind: output, shape index: {}]
  %s19 = sld [smem:[#allocation0]]
  $region118: #{tpu_custom_call.1} parent=0
    _
  %s21 = ssub.s32 1, %s19
  %s22 = scalar_select 0, %s21, %s19
  $region1: #{tpu_custom_call.1} parent=0
    #allocation2 [shape = 'u8[32768]{0}', space=vmem, size = 0x8000, scoped, tag = 'input window, operand 0, single buffered']
    #allocation3 [shape = 's32[1]{0}', space=sflag, size = 0x4, scoped, tag = 'scoped memory for tpu_custom_call.1']
    #allocation4 [shape = 's32[1]{0}', space=sflag, size = 0x4, scoped, tag = 'scoped memory for tpu_custom_call.1']
    #allocation5 [shape = 'u8[512]{0}', space=vmem, size = 0x400, scoped, tag = 'input window, operand 1, single buffered']
    #allocation6 [shape = 's32[1]{0}', space=sflag, size = 0x4, scoped, tag = 'scoped memory for tpu_custom_call.1']
    #allocation7 [shape = 'u8[16384]{0}', space=vmem, size = 0x4000, scoped, tag = 'input window, operand 3, single buffered']
    #allocation8 [shape = 'u8[16384]{0}', space=vmem, size = 0x4000, scoped, tag = 'input window, operand 5, single buffered']
    #allocation9 [shape = 's32[1]{0}', space=sflag, size = 0x4, scoped, tag = 'scoped memory for tpu_custom_call.1']
    #allocation10 [shape = 'u8[16384]{0}', space=vmem, size = 0x4000, scoped, tag = 'input window, operand 7, single buffered']
    #allocation11 [shape = 'u8[16384]{0}', space=vmem, size = 0x4000, scoped, tag = 'input window, operand 8, single buffered']
    #allocation12 [shape = 's32[1]{0}', space=sflag, size = 0x4, scoped, tag = 'scoped memory for tpu_custom_call.1']
    #allocation13 [shape = 'u8[16384]{0}', space=vmem, size = 0x4000, scoped, tag = 'input window, operand 12, single buffered']
    #allocation14 [shape = 'u8[16384]{0}', space=vmem, size = 0x4000, scoped, tag = 'input window, operand 14, single buffered']
    #allocation15 [shape = 's32[1]{0}', space=sflag, size = 0x4, scoped, tag = 'scoped memory for tpu_custom_call.1']
    #allocation16 [shape = 'u8[16384]{0}', space=vmem, size = 0x4000, scoped, tag = 'input window, operand 16, single buffered']
    #allocation17 [shape = 'u8[32768]{0}', space=vmem, size = 0x8000, scoped, tag = 'output window, operand 0, single buffered']
    %23 = vsyncpa [#allocation3], 0
    %24 = vsyncpa [#allocation6], 0
    %25 = vsyncpa [#allocation9], 0
    %26 = vsyncpa [#allocation12], 0
    %27 = vsyncpa [#allocation15], 0
    %28 = vsyncpa [#allocation4], 0
    // Predicated region
    $region2: #{tpu_custom_call.1} parent=1 // pred_check
      _
    $region3: #{tpu_custom_call.1} parent=1 // pred_check_branch
      %30 = sbr.rel (0) target = $region5
    $region4: #{tpu_custom_call.1} parent=1 // pred_region
      %32 = vsyncadd [#allocation3], 0
      %s33 = sshll.u32 %s0, 4
      %s34 = int_to_ptr.hbm [resolvable:$true] %s33
      %s35 = sshll.u32 [#allocation2], 4
      %s36 = int_to_ptr.vmem [resolvable:$true] %s35
      %41 = dma.hbm_to_vmem [thread:$0]  %s34, 1024, %s36, [#allocation3], 128, 128, 8
    $region5: #{tpu_custom_call.1} parent=1 // pred_fallthru
      _
    // Predicated region
    $region6: #{tpu_custom_call.1} parent=1 // pred_check
      _
    $region7: #{tpu_custom_call.1} parent=1 // pred_check_branch
      %43 = sbr.rel (0) target = $region9
    $region8: #{tpu_custom_call.1} parent=1 // pred_region
      %45 = vsyncadd [#allocation6], 0
      %s47 = sshll.u32 %s1, 4
      %s48 = int_to_ptr.hbm [resolvable:$true] %s47
      %s49 = sshll.u32 [#allocation5], 4
      %s50 = int_to_ptr.vmem [resolvable:$true] %s49
      %52 = dma.hbm_to_vmem [thread:$0]  %s48, 16, %s50, [#allocation6]
    $region9: #{tpu_custom_call.1} parent=1 // pred_fallthru
      _
    // Predicated region
    $region10: #{tpu_custom_call.1} parent=1 // pred_check
      _
    $region11: #{tpu_custom_call.1} parent=1 // pred_check_branch
      %54 = sbr.rel (0) target = $region13
    $region12: #{tpu_custom_call.1} parent=1 // pred_region
      _
    $region13: #{tpu_custom_call.1} parent=1 // pred_fallthru
      _
    // Predicated region
    $region14: #{tpu_custom_call.1} parent=1 // pred_check
      _
    $region15: #{tpu_custom_call.1} parent=1 // pred_check_branch
      %56 = sbr.rel (0) target = $region17
    $region16: #{tpu_custom_call.1} parent=1 // pred_region
      %58 = vsyncadd [#allocation6], 0
      %s59 = sshll.u32 %s3, 4
      %s60 = int_to_ptr.hbm [resolvable:$true] %s59
      %s61 = sshll.u32 [#allocation7], 4
      %s62 = int_to_ptr.vmem [resolvable:$true] %s61
      %67 = dma.hbm_to_vmem [thread:$0]  %s60, 512, %s62, [#allocation6], 128, 128, 8
    $region17: #{tpu_custom_call.1} parent=1 // pred_fallthru
      _
    // Predicated region
    $region18: #{tpu_custom_call.1} parent=1 // pred_check
      _
    $region19: #{tpu_custom_call.1} parent=1 // pred_check_branch
      %69 = sbr.rel (0) target = $region21
    $region20: #{tpu_custom_call.1} parent=1 // pred_region
      _
    $region21: #{tpu_custom_call.1} parent=1 // pred_fallthru
      _
    // Predicated region
    $region22: #{tpu_custom_call.1} parent=1 // pred_check
      _
    $region23: #{tpu_custom_call.1} parent=1 // pred_check_branch
      %71 = sbr.rel (0) target = $region25
    $region24: #{tpu_custom_call.1} parent=1 // pred_region
      %73 = vsyncadd [#allocation9], 0
      %s74 = sshll.u32 %s5, 4
      %s75 = int_to_ptr.hbm [resolvable:$true] %s74
      %s76 = sshll.u32 [#allocation8], 4
      %s77 = int_to_ptr.vmem [resolvable:$true] %s76
      %82 = dma.hbm_to_vmem [thread:$0]  %s75, 512, %s77, [#allocation9], 128, 128, 8
    $region25: #{tpu_custom_call.1} parent=1 // pred_fallthru
      _
    // Predicated region
    $region26: #{tpu_custom_call.1} parent=1 // pred_check
      _
    $region27: #{tpu_custom_call.1} parent=1 // pred_check_branch
      %84 = sbr.rel (0) target = $region29
    $region28: #{tpu_custom_call.1} parent=1 // pred_region
      _
    $region29: #{tpu_custom_call.1} parent=1 // pred_fallthru
      _
    // Predicated region
    $region30: #{tpu_custom_call.1} parent=1 // pred_check
      _
    $region31: #{tpu_custom_call.1} parent=1 // pred_check_branch
      %86 = sbr.rel (0) target = $region33
    $region32: #{tpu_custom_call.1} parent=1 // pred_region
      %88 = vsyncadd [#allocation9], 0
      %s89 = sshll.u32 %s7, 4
      %s90 = int_to_ptr.hbm [resolvable:$true] %s89
      %s91 = sshll.u32 [#allocation10], 4
      %s92 = int_to_ptr.vmem [resolvable:$true] %s91
      %97 = dma.hbm_to_vmem [thread:$0]  %s90, 512, %s92, [#allocation9], 128, 128, 8
    $region33: #{tpu_custom_call.1} parent=1 // pred_fallthru
      _
    // Predicated region
    $region34: #{tpu_custom_call.1} parent=1 // pred_check
      _
    $region35: #{tpu_custom_call.1} parent=1 // pred_check_branch
      %99 = sbr.rel (0) target = $region37
    $region36: #{tpu_custom_call.1} parent=1 // pred_region
      %101 = vsyncadd [#allocation12], 0
      %s102 = sshll.u32 %s8, 4
      %s103 = int_to_ptr.hbm [resolvable:$true] %s102
      %s104 = sshll.u32 [#allocation11], 4
      %s105 = int_to_ptr.vmem [resolvable:$true] %s104
      %110 = dma.hbm_to_vmem [thread:$0]  %s103, 512, %s105, [#allocation12], 128, 128, 8
    $region37: #{tpu_custom_call.1} parent=1 // pred_fallthru
      _
    // Predicated region
    $region38: #{tpu_custom_call.1} parent=1 // pred_check
      _
    $region39: #{tpu_custom_call.1} parent=1 // pred_check_branch
      %112 = sbr.rel (0) target = $region41
    $region40: #{tpu_custom_call.1} parent=1 // pred_region
      _
    $region41: #{tpu_custom_call.1} parent=1 // pred_fallthru
      _
    // Predicated region
    $region42: #{tpu_custom_call.1} parent=1 // pred_check
      _
    $region43: #{tpu_custom_call.1} parent=1 // pred_check_branch
      %114 = sbr.rel (0) target = $region45
    $region44: #{tpu_custom_call.1} parent=1 // pred_region
      _
    $region45: #{tpu_custom_call.1} parent=1 // pred_fallthru
      _
    // Predicated region
    $region46: #{tpu_custom_call.1} parent=1 // pred_check
      _
    $region47: #{tpu_custom_call.1} parent=1 // pred_check_branch
      %116 = sbr.rel (0) target = $region49
    $region48: #{tpu_custom_call.1} parent=1 // pred_region
      _
    $region49: #{tpu_custom_call.1} parent=1 // pred_fallthru
      _
    // Predicated region
    $region50: #{tpu_custom_call.1} parent=1 // pred_check
      _
    $region51: #{tpu_custom_call.1} parent=1 // pred_check_branch
      %118 = sbr.rel (0) target = $region53
    $region52: #{tpu_custom_call.1} parent=1 // pred_region
      %120 = vsyncadd [#allocation12], 0
      %s121 = sshll.u32 %s12, 4
      %s122 = int_to_ptr.hbm [resolvable:$true] %s121
      %s123 = sshll.u32 [#allocation13], 4
      %s124 = int_to_ptr.vmem [resolvable:$true] %s123
      %129 = dma.hbm_to_vmem [thread:$0]  %s122, 512, %s124, [#allocation12], 128, 128, 8
    $region53: #{tpu_custom_call.1} parent=1 // pred_fallthru
      _
    // Predicated region
    $region54: #{tpu_custom_call.1} parent=1 // pred_check
      _
    $region55: #{tpu_custom_call.1} parent=1 // pred_check_branch
      %131 = sbr.rel (0) target = $region57
    $region56: #{tpu_custom_call.1} parent=1 // pred_region
      _
    $region57: #{tpu_custom_call.1} parent=1 // pred_fallthru
      _
    // Predicated region
    $region58: #{tpu_custom_call.1} parent=1 // pred_check
      _
    $region59: #{tpu_custom_call.1} parent=1 // pred_check_branch
      %133 = sbr.rel (0) target = $region61
    $region60: #{tpu_custom_call.1} parent=1 // pred_region
      %135 = vsyncadd [#allocation15], 0
      %s136 = sshll.u32 %s14, 4
      %s137 = int_to_ptr.hbm [resolvable:$true] %s136
      %s138 = sshll.u32 [#allocation14], 4
      %s139 = int_to_ptr.vmem [resolvable:$true] %s138
      %144 = dma.hbm_to_vmem [thread:$0]  %s137, 512, %s139, [#allocation15], 128, 128, 8
    $region61: #{tpu_custom_call.1} parent=1 // pred_fallthru
      _
    // Predicated region
    $region62: #{tpu_custom_call.1} parent=1 // pred_check
      _
    $region63: #{tpu_custom_call.1} parent=1 // pred_check_branch
      %146 = sbr.rel (0) target = $region65
    $region64: #{tpu_custom_call.1} parent=1 // pred_region
      _
    $region65: #{tpu_custom_call.1} parent=1 // pred_fallthru
      _
    // Predicated region
    $region66: #{tpu_custom_call.1} parent=1 // pred_check
      _
    $region67: #{tpu_custom_call.1} parent=1 // pred_check_branch
      %148 = sbr.rel (0) target = $region69
    $region68: #{tpu_custom_call.1} parent=1 // pred_region
      %150 = vsyncadd [#allocation15], 0
      %s151 = sshll.u32 %s16, 4
      %s152 = int_to_ptr.hbm [resolvable:$true] %s151
      %s153 = sshll.u32 [#allocation16], 4
      %s154 = int_to_ptr.vmem [resolvable:$true] %s153
      %159 = dma.hbm_to_vmem [thread:$0]  %s152, 512, %s154, [#allocation15], 128, 128, 8
    $region69: #{tpu_custom_call.1} parent=1 // pred_fallthru
      _
    // Predicated region
    $region70: #{tpu_custom_call.1} parent=1 // pred_check
      _
    $region71: #{tpu_custom_call.1} parent=1 // pred_check_branch
      %161 = sbr.rel (0) target = $region73
    $region72: #{tpu_custom_call.1} parent=1 // pred_region
      _
    $region73: #{tpu_custom_call.1} parent=1 // pred_fallthru
      _
    // Predicated region
    $region74: #{tpu_custom_call.1} parent=1 // pred_check
      _
    $region75: #{tpu_custom_call.1} parent=1 // pred_check_branch
      %163 = sbr.rel (0) target = $region77
    $region76: #{tpu_custom_call.1} parent=1 // pred_region
      %165 = dma.done [#allocation3], 1024
    $region77: #{tpu_custom_call.1} parent=1 // pred_fallthru
      _
    // Predicated region
    $region78: #{tpu_custom_call.1} parent=1 // pred_check
      _
    $region79: #{tpu_custom_call.1} parent=1 // pred_check_branch
      %167 = sbr.rel (0) target = $region81
    $region80: #{tpu_custom_call.1} parent=1 // pred_region
      %169 = dma.done [#allocation6], 16
    $region81: #{tpu_custom_call.1} parent=1 // pred_fallthru
      _
    // Predicated region
    $region82: #{tpu_custom_call.1} parent=1 // pred_check
      _
    $region83: #{tpu_custom_call.1} parent=1 // pred_check_branch
      %171 = sbr.rel (0) target = $region85
    $region84: #{tpu_custom_call.1} parent=1 // pred_region
      %173 = dma.done [#allocation6], 512
    $region85: #{tpu_custom_call.1} parent=1 // pred_fallthru
      _
    // Predicated region
    $region86: #{tpu_custom_call.1} parent=1 // pred_check
      _
    $region87: #{tpu_custom_call.1} parent=1 // pred_check_branch
      %175 = sbr.rel (0) target = $region89
    $region88: #{tpu_custom_call.1} parent=1 // pred_region
      %177 = dma.done [#allocation9], 512
    $region89: #{tpu_custom_call.1} parent=1 // pred_fallthru
      _
    // Predicated region
    $region90: #{tpu_custom_call.1} parent=1 // pred_check
      _
    $region91: #{tpu_custom_call.1} parent=1 // pred_check_branch
      %179 = sbr.rel (0) target = $region93
    $region92: #{tpu_custom_call.1} parent=1 // pred_region
      %181 = dma.done [#allocation9], 512
    $region93: #{tpu_custom_call.1} parent=1 // pred_fallthru
      _
    // Predicated region
    $region94: #{tpu_custom_call.1} parent=1 // pred_check
      _
    $region95: #{tpu_custom_call.1} parent=1 // pred_check_branch
      %183 = sbr.rel (0) target = $region97
    $region96: #{tpu_custom_call.1} parent=1 // pred_region
      %185 = dma.done [#allocation12], 512
    $region97: #{tpu_custom_call.1} parent=1 // pred_fallthru
      _
    // Predicated region
    $region98: #{tpu_custom_call.1} parent=1 // pred_check
      _
    $region99: #{tpu_custom_call.1} parent=1 // pred_check_branch
      %187 = sbr.rel (0) target = $region101
    $region100: #{tpu_custom_call.1} parent=1 // pred_region
      %189 = dma.done [#allocation12], 512
    $region101: #{tpu_custom_call.1} parent=1 // pred_fallthru
      _
    // Predicated region
    $region102: #{tpu_custom_call.1} parent=1 // pred_check
      _
    $region103: #{tpu_custom_call.1} parent=1 // pred_check_branch
      %191 = sbr.rel (0) target = $region105
    $region104: #{tpu_custom_call.1} parent=1 // pred_region
      %193 = dma.done [#allocation15], 512
    $region105: #{tpu_custom_call.1} parent=1 // pred_fallthru
      _
    // Predicated region
    $region106: #{tpu_custom_call.1} parent=1 // pred_check
      _
    $region107: #{tpu_custom_call.1} parent=1 // pred_check_branch
      %195 = sbr.rel (0) target = $region109
    $region108: #{tpu_custom_call.1} parent=1 // pred_region
      %197 = dma.done [#allocation15], 512
    $region109: #{tpu_custom_call.1} parent=1 // pred_fallthru
      _
    %v198 = vld [vmem:[#allocation2] sm:$0xff]
    %v199 = vld [vmem:[#allocation2 + $0x8] sm:$0xff]
    %v200 = vld [vmem:[#allocation2 + $0x10] sm:$0xff]
    %v201 = vld [vmem:[#allocation2 + $0x18] sm:$0xff]
    %v202 = vld [vmem:[#allocation2 + $0x20] sm:$0xff]
    %v203 = vld [vmem:[#allocation2 + $0x28] sm:$0xff]
    %v204 = vld [vmem:[#allocation2 + $0x30] sm:$0xff]
    %v205 = vld [vmem:[#allocation2 + $0x38] sm:$0xff]
    %v206 = vld [vmem:[#allocation5] sm:$0x1]
    %v207 = vld [vmem:[%s2] sm:$0x1]
    %vm208 = vcmask 261120
    %v209 = vsel %vm208, %v198, 0.0
    %210 = vadd.xlane.f32.xlu0 %v209
    %v211 = vpop.xlane.xlu0 %210
    %v212 = vsel %vm208, %v199, 0.0
    %213 = vadd.xlane.f32.xlu0 %v212
    %v214 = vpop.xlane.xlu0 %213
    %v215 = vsel %vm208, %v200, 0.0
    %216 = vadd.xlane.f32.xlu0 %v215
    %v217 = vpop.xlane.xlu0 %216
    %v218 = vsel %vm208, %v201, 0.0
    %219 = vadd.xlane.f32.xlu0 %v218
    %v220 = vpop.xlane.xlu0 %219
    %v221 = vsel %vm208, %v202, 0.0
    %222 = vadd.xlane.f32.xlu0 %v221
    %v223 = vpop.xlane.xlu0 %222
    %v224 = vsel %vm208, %v203, 0.0
    %225 = vadd.xlane.f32.xlu0 %v224
    %v226 = vpop.xlane.xlu0 %225
    %v227 = vsel %vm208, %v204, 0.0
    %228 = vadd.xlane.f32.xlu0 %v227
    %v229 = vpop.xlane.xlu0 %228
    %v230 = vsel %vm208, %v205, 0.0
    %231 = vadd.xlane.f32.xlu0 %v230
    %v232 = vpop.xlane.xlu0 %231
    %v233 = vrcp.pop 32.0
    %v234 = vmul.f32 32.0, %v233
    %v235 = vsub.f32 1.0, %v234
    %v236 = vmul.f32 %v233, %v235
    %v237 = vadd.f32 %v233, %v236
    %vm238 = vweird.f32 %v233
    %v239 = vsel %vm238, %v233, %v237
    %v240 = vmul.f32 %v211, %v239
    %v241 = vmul.f32 %v214, %v239
    %v242 = vmul.f32 %v217, %v239
    %v243 = vmul.f32 %v220, %v239
    %v244 = vmul.f32 %v223, %v239
    %v245 = vmul.f32 %v226, %v239
    %v246 = vmul.f32 %v229, %v239
    %v247 = vmul.f32 %v232, %v239
    %v248 = vmul.f32 %v198, %v198
    %v249 = vmul.f32 %v199, %v199
    %v250 = vmul.f32 %v200, %v200
    %v251 = vmul.f32 %v201, %v201
    %v252 = vmul.f32 %v202, %v202
    %v253 = vmul.f32 %v203, %v203
    %v254 = vmul.f32 %v204, %v204
    %v255 = vmul.f32 %v205, %v205
    %v256 = vsel %vm208, %v248, 0.0
    %257 = vadd.xlane.f32.xlu0 %v256
    %v258 = vpop.xlane.xlu0 %257
    %v259 = vsel %vm208, %v249, 0.0
    %260 = vadd.xlane.f32.xlu0 %v259
    %v261 = vpop.xlane.xlu0 %260
    %v262 = vsel %vm208, %v250, 0.0
    %263 = vadd.xlane.f32.xlu0 %v262
    %v264 = vpop.xlane.xlu0 %263
    %v265 = vsel %vm208, %v251, 0.0
    %266 = vadd.xlane.f32.xlu0 %v265
    %v267 = vpop.xlane.xlu0 %266
    %v268 = vsel %vm208, %v252, 0.0
    %269 = vadd.xlane.f32.xlu0 %v268
    %v270 = vpop.xlane.xlu0 %269
    %v271 = vsel %vm208, %v253, 0.0
    %272 = vadd.xlane.f32.xlu0 %v271
    %v273 = vpop.xlane.xlu0 %272
    %v274 = vsel %vm208, %v254, 0.0
    %275 = vadd.xlane.f32.xlu0 %v274
    %v276 = vpop.xlane.xlu0 %275
    %v277 = vsel %vm208, %v255, 0.0
    %278 = vadd.xlane.f32.xlu0 %v277
    %v279 = vpop.xlane.xlu0 %278
    %v280 = vmul.f32 %v258, %v239
    %v281 = vmul.f32 %v261, %v239
    %v282 = vmul.f32 %v264, %v239
    %v283 = vmul.f32 %v267, %v239
    %v284 = vmul.f32 %v270, %v239
    %v285 = vmul.f32 %v273, %v239
    %v286 = vmul.f32 %v276, %v239
    %v287 = vmul.f32 %v279, %v239
    %v288 = vmul.f32 %v240, %v240
    %v289 = vmul.f32 %v241, %v241
    %v290 = vmul.f32 %v242, %v242
    %v291 = vmul.f32 %v243, %v243
    %v292 = vmul.f32 %v244, %v244
    %v293 = vmul.f32 %v245, %v245
    %v294 = vmul.f32 %v246, %v246
    %v295 = vmul.f32 %v247, %v247
    %v296 = vsub.f32 %v280, %v288
    %v297 = vsub.f32 %v281, %v289
    %v298 = vsub.f32 %v282, %v290
    %v299 = vsub.f32 %v283, %v291
    %v300 = vsub.f32 %v284, %v292
    %v301 = vsub.f32 %v285, %v293
    %v302 = vsub.f32 %v286, %v294
    %v303 = vsub.f32 %v287, %v295
    %v304 = vsub.f32 %v198, %v240
    %v305 = vsub.f32 %v199, %v241
    %v306 = vsub.f32 %v200, %v242
    %v307 = vsub.f32 %v201, %v243
    %v308 = vsub.f32 %v202, %v244
    %v309 = vsub.f32 %v203, %v245
    %v310 = vsub.f32 %v204, %v246
    %v311 = vsub.f32 %v205, %v247
    %v312 = vadd.f32 %v296, 1e-05
    %v313 = vadd.f32 %v297, 1e-05
    %v314 = vadd.f32 %v298, 1e-05
    %v315 = vadd.f32 %v299, 1e-05
    %v316 = vadd.f32 %v300, 1e-05
    %v317 = vadd.f32 %v301, 1e-05
    %v318 = vadd.f32 %v302, 1e-05
    %v319 = vadd.f32 %v303, 1e-05
    %v320 = vrsqrt.pop %v312
    %v321 = vmul.f32 %v320, %v312
    %v322 = vmul.f32 %v321, %v320
    %v323 = vmul.f32 0.5, %v322
    %v324 = vsub.f32 1.5, %v323
    %v325 = vmul.f32 %v320, %v324
    %vm326 = vweird.f32 %v312
    %vm327 = vweird.f32 %v320
    %vm328 = vmor %vm326, %vm327
    %v329 = vsel %vm328, %v320, %v325
    %v330 = vrsqrt.pop %v313
    %v331 = vmul.f32 %v330, %v313
    %v332 = vmul.f32 %v331, %v330
    %v333 = vmul.f32 0.5, %v332
    %v334 = vsub.f32 1.5, %v333
    %v335 = vmul.f32 %v330, %v334
    %vm336 = vweird.f32 %v313
    %vm337 = vweird.f32 %v330
    %vm338 = vmor %vm336, %vm337
    %v339 = vsel %vm338, %v330, %v335
    %v340 = vrsqrt.pop %v314
    %v341 = vmul.f32 %v340, %v314
    %v342 = vmul.f32 %v341, %v340
    %v343 = vmul.f32 0.5, %v342
    %v344 = vsub.f32 1.5, %v343
    %v345 = vmul.f32 %v340, %v344
    %vm346 = vweird.f32 %v314
    %vm347 = vweird.f32 %v340
    %vm348 = vmor %vm346, %vm347
    %v349 = vsel %vm348, %v340, %v345
    %v350 = vrsqrt.pop %v315
    %v351 = vmul.f32 %v350, %v315
    %v352 = vmul.f32 %v351, %v350
    %v353 = vmul.f32 0.5, %v352
    %v354 = vsub.f32 1.5, %v353
    %v355 = vmul.f32 %v350, %v354
    %vm356 = vweird.f32 %v315
    %vm357 = vweird.f32 %v350
    %vm358 = vmor %vm356, %vm357
    %v359 = vsel %vm358, %v350, %v355
    %v360 = vrsqrt.pop %v316
    %v361 = vmul.f32 %v360, %v316
    %v362 = vmul.f32 %v361, %v360
    %v363 = vmul.f32 0.5, %v362
    %v364 = vsub.f32 1.5, %v363
    %v365 = vmul.f32 %v360, %v364
    %vm366 = vweird.f32 %v316
    %vm367 = vweird.f32 %v360
    %vm368 = vmor %vm366, %vm367
    %v369 = vsel %vm368, %v360, %v365
    %v370 = vrsqrt.pop %v317
    %v371 = vmul.f32 %v370, %v317
    %v372 = vmul.f32 %v371, %v370
    %v373 = vmul.f32 0.5, %v372
    %v374 = vsub.f32 1.5, %v373
    %v375 = vmul.f32 %v370, %v374
    %vm376 = vweird.f32 %v317
    %vm377 = vweird.f32 %v370
    %vm378 = vmor %vm376, %vm377
    %v379 = vsel %vm378, %v370, %v375
    %v380 = vrsqrt.pop %v318
    %v381 = vmul.f32 %v380, %v318
    %v382 = vmul.f32 %v381, %v380
    %v383 = vmul.f32 0.5, %v382
    %v384 = vsub.f32 1.5, %v383
    %v385 = vmul.f32 %v380, %v384
    %vm386 = vweird.f32 %v318
    %vm387 = vweird.f32 %v380
    %vm388 = vmor %vm386, %vm387
    %v389 = vsel %vm388, %v380, %v385
    %v390 = vrsqrt.pop %v319
    %v391 = vmul.f32 %v390, %v319
    %v392 = vmul.f32 %v391, %v390
    %v393 = vmul.f32 0.5, %v392
    %v394 = vsub.f32 1.5, %v393
    %v395 = vmul.f32 %v390, %v394
    %vm396 = vweird.f32 %v319
    %vm397 = vweird.f32 %v390
    %vm398 = vmor %vm396, %vm397
    %v399 = vsel %vm398, %v390, %v395
    %v400 = vmul.f32 %v304, %v329
    %v401 = vmul.f32 %v305, %v339
    %v402 = vmul.f32 %v306, %v349
    %v403 = vmul.f32 %v307, %v359
    %v404 = vmul.f32 %v308, %v369
    %v405 = vmul.f32 %v309, %v379
    %v406 = vmul.f32 %v310, %v389
    %v407 = vmul.f32 %v311, %v399
    %v409 = vperm.slane %v206, 0
    %v411 = vmul.f32 %v400, %v409
    %v412 = vmul.f32 %v401, %v409
    %v413 = vmul.f32 %v402, %v409
    %v414 = vmul.f32 %v403, %v409
    %v415 = vmul.f32 %v404, %v409
    %v416 = vmul.f32 %v405, %v409
    %v417 = vmul.f32 %v406, %v409
    %v418 = vmul.f32 %v407, %v409
    %v420 = vperm.slane %v207, 0
    %v422 = vadd.f32 %v411, %v420
    %v423 = vadd.f32 %v412, %v420
    %v424 = vadd.f32 %v413, %v420
    %v425 = vadd.f32 %v414, %v420
    %v426 = vadd.f32 %v415, %v420
    %v427 = vadd.f32 %v416, %v420
    %v428 = vadd.f32 %v417, %v420
    %v429 = vadd.f32 %v418, %v420
    %v430 = vld [vmem:[#allocation7] sm:$0xff]
    %v431 = vld [vmem:[#allocation7 + $0x8] sm:$0xff]
    %v432 = vld [vmem:[#allocation7 + $0x10] sm:$0xff]
    %v433 = vld [vmem:[#allocation7 + $0x18] sm:$0xff]
    %v434 = vld [vmem:[%s4] sm:$0x1]
    %v436 = vperm.slane %v434, 0
    %v439 = vsel %vm208, %v422, 0
    %v442 = vsel %vm208, %v423, 0
    %v445 = vsel %vm208, %v424, 0
    %v448 = vsel %vm208, %v425, 0
    %v451 = vsel %vm208, %v426, 0
    %v454 = vsel %vm208, %v427, 0
    %v457 = vsel %vm208, %v428, 0
    %v460 = vsel %vm208, %v429, 0
    %462 = vmatpush.msra.mxu0 0.0
    %463 = vmatpush.msra.mxu0 0.0
    %464 = vmatpush.msra.mxu0 0.0
    %465 = vmatpush.msra.mxu0 0.0
    %466 = vmatpush.msra.mxu0 0.0
    %467 = vmatpush.msra.mxu0 0.0
    %468 = vmatpush.msra.mxu0 0.0
    %469 = vmatpush.msra.mxu0 0.0
    %470 = vmatpush.msra.mxu0 0.0
    %471 = vmatpush.msra.mxu0 0.0
    %472 = vmatpush.msra.mxu0 0.0
    %473 = vmatpush.msra.mxu0 0.0
    %474 = vmatpush.msra.mxu0 %v433
    %475 = vmatpush.msra.mxu0 %v432
    %476 = vmatpush.msra.mxu0 %v431
    %477 = vmatpush.msra.mxu0 %v430
    %478 = vmatmul.f32.gmra.mxu0 %v439
    %v479 = vpop.f32.mrf.mxu0
    %v480 = vadd.f32 %v436, %v479
    %481 = vmatmul.f32.gmra.mxu0 %v442
    %v482 = vpop.f32.mrf.mxu0
    %v483 = vadd.f32 %v436, %v482
    %484 = vmatmul.f32.gmra.mxu0 %v445
    %v485 = vpop.f32.mrf.mxu0
    %v486 = vadd.f32 %v436, %v485
    %487 = vmatmul.f32.gmra.mxu0 %v448
    %v488 = vpop.f32.mrf.mxu0
    %v489 = vadd.f32 %v436, %v488
    %490 = vmatmul.f32.gmra.mxu0 %v451
    %v491 = vpop.f32.mrf.mxu0
    %v492 = vadd.f32 %v436, %v491
    %493 = vmatmul.f32.gmra.mxu0 %v454
    %v494 = vpop.f32.mrf.mxu0
    %v495 = vadd.f32 %v436, %v494
    %496 = vmatmul.f32.gmra.mxu0 %v457
    %v497 = vpop.f32.mrf.mxu0
    %v498 = vadd.f32 %v436, %v497
    %499 = vmatmul.f32.gmra.mxu0 %v460
    %v500 = vpop.f32.mrf.mxu0
    %v501 = vadd.f32 %v436, %v500
    %502 = vdwg.mxu0
    %v503 = vld [vmem:[#allocation8] sm:$0xff]
    %v504 = vld [vmem:[#allocation8 + $0x8] sm:$0xff]
    %v505 = vld [vmem:[#allocation8 + $0x10] sm:$0xff]
    %v506 = vld [vmem:[#allocation8 + $0x18] sm:$0xff]
    %v507 = vld [vmem:[%s6] sm:$0x1]
    %v509 = vperm.slane %v507, 0
    %511 = vmatpush.msra.mxu0 0.0
    %512 = vmatpush.msra.mxu0 0.0
    %513 = vmatpush.msra.mxu0 0.0
    %514 = vmatpush.msra.mxu0 0.0
    %515 = vmatpush.msra.mxu0 0.0
    %516 = vmatpush.msra.mxu0 0.0
    %517 = vmatpush.msra.mxu0 0.0
    %518 = vmatpush.msra.mxu0 0.0
    %519 = vmatpush.msra.mxu0 0.0
    %520 = vmatpush.msra.mxu0 0.0
    %521 = vmatpush.msra.mxu0 0.0
    %522 = vmatpush.msra.mxu0 0.0
    %523 = vmatpush.msra.mxu0 %v506
    %524 = vmatpush.msra.mxu0 %v505
    %525 = vmatpush.msra.mxu0 %v504
    %526 = vmatpush.msra.mxu0 %v503
    %527 = vmatmul.f32.gmra.mxu0 %v439
    %v528 = vpop.f32.mrf.mxu0
    %v529 = vadd.f32 %v509, %v528
    %530 = vmatmul.f32.gmra.mxu0 %v442
    %v531 = vpop.f32.mrf.mxu0
    %v532 = vadd.f32 %v509, %v531
    %533 = vmatmul.f32.gmra.mxu0 %v445
    %v534 = vpop.f32.mrf.mxu0
    %v535 = vadd.f32 %v509, %v534
    %536 = vmatmul.f32.gmra.mxu0 %v448
    %v537 = vpop.f32.mrf.mxu0
    %v538 = vadd.f32 %v509, %v537
    %539 = vmatmul.f32.gmra.mxu0 %v451
    %v540 = vpop.f32.mrf.mxu0
    %v541 = vadd.f32 %v509, %v540
    %542 = vmatmul.f32.gmra.mxu0 %v454
    %v543 = vpop.f32.mrf.mxu0
    %v544 = vadd.f32 %v509, %v543
    %545 = vmatmul.f32.gmra.mxu0 %v457
    %v546 = vpop.f32.mrf.mxu0
    %v547 = vadd.f32 %v509, %v546
    %548 = vmatmul.f32.gmra.mxu0 %v460
    %v549 = vpop.f32.mrf.mxu0
    %v550 = vadd.f32 %v509, %v549
    %551 = vdwg.mxu0
    %v552 = vld [vmem:[#allocation10] sm:$0xff]
    %v553 = vld [vmem:[#allocation10 + $0x8] sm:$0xff]
    %v554 = vld [vmem:[#allocation10 + $0x10] sm:$0xff]
    %v555 = vld [vmem:[#allocation10 + $0x18] sm:$0xff]
    %v556 = vmul.f32 %v480, %v552
    %v557 = vmul.f32 %v483, %v553
    %v558 = vmul.f32 %v486, %v554
    %v559 = vmul.f32 %v489, %v555
    %v560 = vmul.f32 %v492, %v552
    %v561 = vmul.f32 %v495, %v553
    %v562 = vmul.f32 %v498, %v554
    %v563 = vmul.f32 %v501, %v555
    %v564 = vsel %vm208, %v556, -inf
    %v565 = vsel %vm208, %v557, -inf
    %v566 = vsel %vm208, %v558, -inf
    %v567 = vmax.f32 %v564, %v566
    %v568 = vsel %vm208, %v559, -inf
    %v569 = vmax.f32 %v565, %v568
    %v570 = vmax.f32 %v567, %v569
    %v571 = vrot.slane %v570, 4
    %v572 = vmax.f32 %v570, %v571
    %v573 = vrot.slane %v572, 2
    %v574 = vmax.f32 %v572, %v573
    %v575 = vrot.slane %v574, 1
    %v576 = vmax.f32 %v574, %v575
    %v577 = vsel %vm208, %v560, -inf
    %v578 = vsel %vm208, %v561, -inf
    %v579 = vsel %vm208, %v562, -inf
    %v580 = vmax.f32 %v577, %v579
    %v581 = vsel %vm208, %v563, -inf
    %v582 = vmax.f32 %v578, %v581
    %v583 = vmax.f32 %v580, %v582
    %v584 = vrot.slane %v583, 4
    %v585 = vmax.f32 %v583, %v584
    %v586 = vrot.slane %v585, 2
    %v587 = vmax.f32 %v585, %v586
    %v588 = vrot.slane %v587, 1
    %v589 = vmax.f32 %v587, %v588
    %v590 = vsub.f32 %v556, %v576
    %v591 = vsub.f32 %v557, %v576
    %v592 = vsub.f32 %v558, %v576
    %v593 = vsub.f32 %v559, %v576
    %v594 = vsub.f32 %v560, %v589
    %v595 = vsub.f32 %v561, %v589
    %v596 = vsub.f32 %v562, %v589
    %v597 = vsub.f32 %v563, %v589
    %v598 = vmul.f32 %v590, 1.442695
    %v599 = vpow.pop %v598
    %v600 = vmul.f32 %v591, 1.442695
    %v601 = vpow.pop %v600
    %v602 = vmul.f32 %v592, 1.442695
    %v603 = vpow.pop %v602
    %v604 = vmul.f32 %v593, 1.442695
    %v605 = vpow.pop %v604
    %v606 = vmul.f32 %v594, 1.442695
    %v607 = vpow.pop %v606
    %v608 = vmul.f32 %v595, 1.442695
    %v609 = vpow.pop %v608
    %v610 = vmul.f32 %v596, 1.442695
    %v611 = vpow.pop %v610
    %v612 = vmul.f32 %v597, 1.442695
    %v613 = vpow.pop %v612
    %v614 = vsel %vm208, %v599, 0.0
    %v615 = vsel %vm208, %v601, 0.0
    %v616 = vadd.f32 %v614, %v615
    %v617 = vsel %vm208, %v603, 0.0
    %v618 = vadd.f32 %v616, %v617
    %v619 = vsel %vm208, %v605, 0.0
    %v620 = vadd.f32 %v618, %v619
    %v621 = vrot.slane %v620, 4
    %v622 = vadd.f32 %v620, %v621
    %v623 = vrot.slane %v622, 2
    %v624 = vadd.f32 %v622, %v623
    %v625 = vrot.slane %v624, 1
    %v626 = vadd.f32 %v624, %v625
    %v627 = vsel %vm208, %v607, 0.0
    %v628 = vsel %vm208, %v609, 0.0
    %v629 = vadd.f32 %v627, %v628
    %v630 = vsel %vm208, %v611, 0.0
    %v631 = vadd.f32 %v629, %v630
    %v632 = vsel %vm208, %v613, 0.0
    %v633 = vadd.f32 %v631, %v632
    %v634 = vrot.slane %v633, 4
    %v635 = vadd.f32 %v633, %v634
    %v636 = vrot.slane %v635, 2
    %v637 = vadd.f32 %v635, %v636
    %v638 = vrot.slane %v637, 1
    %v639 = vadd.f32 %v637, %v638
    %v640 = vmul.f32 %v599, %v480
    %v641 = vmul.f32 %v601, %v483
    %v642 = vmul.f32 %v603, %v486
    %v643 = vmul.f32 %v605, %v489
    %v644 = vmul.f32 %v607, %v492
    %v645 = vmul.f32 %v609, %v495
    %v646 = vmul.f32 %v611, %v498
    %v647 = vmul.f32 %v613, %v501
    %v648 = vsel %vm208, %v640, 0.0
    %v649 = vsel %vm208, %v641, 0.0
    %v650 = vadd.f32 %v648, %v649
    %v651 = vsel %vm208, %v642, 0.0
    %v652 = vadd.f32 %v650, %v651
    %v653 = vsel %vm208, %v643, 0.0
    %v654 = vadd.f32 %v652, %v653
    %v655 = vrot.slane %v654, 4
    %v656 = vadd.f32 %v654, %v655
    %v657 = vrot.slane %v656, 2
    %v658 = vadd.f32 %v656, %v657
    %v659 = vrot.slane %v658, 1
    %v660 = vadd.f32 %v658, %v659
    %v661 = vsel %vm208, %v644, 0.0
    %v662 = vsel %vm208, %v645, 0.0
    %v663 = vadd.f32 %v661, %v662
    %v664 = vsel %vm208, %v646, 0.0
    %v665 = vadd.f32 %v663, %v664
    %v666 = vsel %vm208, %v647, 0.0
    %v667 = vadd.f32 %v665, %v666
    %v668 = vrot.slane %v667, 4
    %v669 = vadd.f32 %v667, %v668
    %v670 = vrot.slane %v669, 2
    %v671 = vadd.f32 %v669, %v670
    %v672 = vrot.slane %v671, 1
    %v673 = vadd.f32 %v671, %v672
    %v674 = vrcp.pop %v626
    %v675 = vmul.f32 %v626, %v674
    %v676 = vsub.f32 1.0, %v675
    %v677 = vmul.f32 %v674, %v676
    %v678 = vadd.f32 %v674, %v677
    %vm679 = vweird.f32 %v626
    %vm680 = vweird.f32 %v674
    %vm681 = vmor %vm679, %vm680
    %v682 = vsel %vm681, %v674, %v678
    %v683 = vand.u32 2147483647, %v626
    %vm684 = vcmp.eq.f32.partialorder %v683, 8.507059e+37
    %v685 = vand.u32 %v626, 2147483648
    %v686 = vor.u32 1.1754944e-38, %v685
    %v687 = vsel %vm684, %v686, %v682
    %v688 = vmul.f32 %v660, %v687
    %v689 = vrcp.pop %v639
    %v690 = vmul.f32 %v639, %v689
    %v691 = vsub.f32 1.0, %v690
    %v692 = vmul.f32 %v689, %v691
    %v693 = vadd.f32 %v689, %v692
    %vm694 = vweird.f32 %v639
    %vm695 = vweird.f32 %v689
    %vm696 = vmor %vm694, %vm695
    %v697 = vsel %vm696, %v689, %v693
    %v698 = vand.u32 2147483647, %v639
    %vm699 = vcmp.eq.f32.partialorder %v698, 8.507059e+37
    %v700 = vand.u32 %v639, 2147483648
    %v701 = vor.u32 1.1754944e-38, %v700
    %v702 = vsel %vm699, %v701, %v697
    %v703 = vmul.f32 %v673, %v702
    %v704 = vmul.f32 %v529, %v688
    %v705 = vmul.f32 %v532, %v688
    %v706 = vmul.f32 %v535, %v688
    %v707 = vmul.f32 %v538, %v688
    %v708 = vmul.f32 %v541, %v703
    %v709 = vmul.f32 %v544, %v703
    %v710 = vmul.f32 %v547, %v703
    %v711 = vmul.f32 %v550, %v703
    %v712 = vld [vmem:[#allocation11] sm:$0xff]
    %v713 = vld [vmem:[#allocation11 + $0x8] sm:$0xff]
    %v714 = vld [vmem:[#allocation11 + $0x10] sm:$0xff]
    %v715 = vld [vmem:[#allocation11 + $0x18] sm:$0xff]
    %v716 = vld [vmem:[%s9] sm:$0x1]
    %v718 = vperm.slane %v716, 0
    %v721 = vsel %vm208, %v704, 0
    %v724 = vsel %vm208, %v705, 0
    %v727 = vsel %vm208, %v706, 0
    %v730 = vsel %vm208, %v707, 0
    %v733 = vsel %vm208, %v708, 0
    %v736 = vsel %vm208, %v709, 0
    %v739 = vsel %vm208, %v710, 0
    %v742 = vsel %vm208, %v711, 0
    %744 = vmatpush.msra.mxu0 0.0
    %745 = vmatpush.msra.mxu0 0.0
    %746 = vmatpush.msra.mxu0 0.0
    %747 = vmatpush.msra.mxu0 0.0
    %748 = vmatpush.msra.mxu0 0.0
    %749 = vmatpush.msra.mxu0 0.0
    %750 = vmatpush.msra.mxu0 0.0
    %751 = vmatpush.msra.mxu0 0.0
    %752 = vmatpush.msra.mxu0 0.0
    %753 = vmatpush.msra.mxu0 0.0
    %754 = vmatpush.msra.mxu0 0.0
    %755 = vmatpush.msra.mxu0 0.0
    %756 = vmatpush.msra.mxu0 %v715
    %757 = vmatpush.msra.mxu0 %v714
    %758 = vmatpush.msra.mxu0 %v713
    %759 = vmatpush.msra.mxu0 %v712
    %760 = vmatmul.f32.gmra.mxu0 %v721
    %v761 = vpop.f32.mrf.mxu0
    %v762 = vadd.f32 %v718, %v761
    %763 = vmatmul.f32.gmra.mxu0 %v724
    %v764 = vpop.f32.mrf.mxu0
    %v765 = vadd.f32 %v718, %v764
    %766 = vmatmul.f32.gmra.mxu0 %v727
    %v767 = vpop.f32.mrf.mxu0
    %v768 = vadd.f32 %v718, %v767
    %769 = vmatmul.f32.gmra.mxu0 %v730
    %v770 = vpop.f32.mrf.mxu0
    %v771 = vadd.f32 %v718, %v770
    %772 = vmatmul.f32.gmra.mxu0 %v733
    %v773 = vpop.f32.mrf.mxu0
    %v774 = vadd.f32 %v718, %v773
    %775 = vmatmul.f32.gmra.mxu0 %v736
    %v776 = vpop.f32.mrf.mxu0
    %v777 = vadd.f32 %v718, %v776
    %778 = vmatmul.f32.gmra.mxu0 %v739
    %v779 = vpop.f32.mrf.mxu0
    %v780 = vadd.f32 %v718, %v779
    %781 = vmatmul.f32.gmra.mxu0 %v742
    %v782 = vpop.f32.mrf.mxu0
    %v783 = vadd.f32 %v718, %v782
    %784 = vdwg.mxu0
    %v785 = vadd.f32 %v198, %v762
    %v786 = vadd.f32 %v199, %v765
    %v787 = vadd.f32 %v200, %v768
    %v788 = vadd.f32 %v201, %v771
    %v789 = vadd.f32 %v202, %v774
    %v790 = vadd.f32 %v203, %v777
    %v791 = vadd.f32 %v204, %v780
    %v792 = vadd.f32 %v205, %v783
    %v793 = vld [vmem:[%s10] sm:$0x1]
    %v794 = vld [vmem:[%s11] sm:$0x1]
    %v795 = vsel %vm208, %v785, 0.0
    %796 = vadd.xlane.f32.xlu0 %v795
    %v797 = vpop.xlane.xlu0 %796
    %v798 = vsel %vm208, %v786, 0.0
    %799 = vadd.xlane.f32.xlu0 %v798
    %v800 = vpop.xlane.xlu0 %799
    %v801 = vsel %vm208, %v787, 0.0
    %802 = vadd.xlane.f32.xlu0 %v801
    %v803 = vpop.xlane.xlu0 %802
    %v804 = vsel %vm208, %v788, 0.0
    %805 = vadd.xlane.f32.xlu0 %v804
    %v806 = vpop.xlane.xlu0 %805
    %v807 = vsel %vm208, %v789, 0.0
    %808 = vadd.xlane.f32.xlu0 %v807
    %v809 = vpop.xlane.xlu0 %808
    %v810 = vsel %vm208, %v790, 0.0
    %811 = vadd.xlane.f32.xlu0 %v810
    %v812 = vpop.xlane.xlu0 %811
    %v813 = vsel %vm208, %v791, 0.0
    %814 = vadd.xlane.f32.xlu0 %v813
    %v815 = vpop.xlane.xlu0 %814
    %v816 = vsel %vm208, %v792, 0.0
    %817 = vadd.xlane.f32.xlu0 %v816
    %v818 = vpop.xlane.xlu0 %817
    %v819 = vmul.f32 %v797, %v239
    %v820 = vmul.f32 %v800, %v239
    %v821 = vmul.f32 %v803, %v239
    %v822 = vmul.f32 %v806, %v239
    %v823 = vmul.f32 %v809, %v239
    %v824 = vmul.f32 %v812, %v239
    %v825 = vmul.f32 %v815, %v239
    %v826 = vmul.f32 %v818, %v239
    %v827 = vmul.f32 %v785, %v785
    %v828 = vmul.f32 %v786, %v786
    %v829 = vmul.f32 %v787, %v787
    %v830 = vmul.f32 %v788, %v788
    %v831 = vmul.f32 %v789, %v789
    %v832 = vmul.f32 %v790, %v790
    %v833 = vmul.f32 %v791, %v791
    %v834 = vmul.f32 %v792, %v792
    %v835 = vsel %vm208, %v827, 0.0
    %836 = vadd.xlane.f32.xlu0 %v835
    %v837 = vpop.xlane.xlu0 %836
    %v838 = vsel %vm208, %v828, 0.0
    %839 = vadd.xlane.f32.xlu0 %v838
    %v840 = vpop.xlane.xlu0 %839
    %v841 = vsel %vm208, %v829, 0.0
    %842 = vadd.xlane.f32.xlu0 %v841
    %v843 = vpop.xlane.xlu0 %842
    %v844 = vsel %vm208, %v830, 0.0
    %845 = vadd.xlane.f32.xlu0 %v844
    %v846 = vpop.xlane.xlu0 %845
    %v847 = vsel %vm208, %v831, 0.0
    %848 = vadd.xlane.f32.xlu0 %v847
    %v849 = vpop.xlane.xlu0 %848
    %v850 = vsel %vm208, %v832, 0.0
    %851 = vadd.xlane.f32.xlu0 %v850
    %v852 = vpop.xlane.xlu0 %851
    %v853 = vsel %vm208, %v833, 0.0
    %854 = vadd.xlane.f32.xlu0 %v853
    %v855 = vpop.xlane.xlu0 %854
    %v856 = vsel %vm208, %v834, 0.0
    %857 = vadd.xlane.f32.xlu0 %v856
    %v858 = vpop.xlane.xlu0 %857
    %v859 = vmul.f32 %v837, %v239
    %v860 = vmul.f32 %v840, %v239
    %v861 = vmul.f32 %v843, %v239
    %v862 = vmul.f32 %v846, %v239
    %v863 = vmul.f32 %v849, %v239
    %v864 = vmul.f32 %v852, %v239
    %v865 = vmul.f32 %v855, %v239
    %v866 = vmul.f32 %v858, %v239
    %v867 = vmul.f32 %v819, %v819
    %v868 = vmul.f32 %v820, %v820
    %v869 = vmul.f32 %v821, %v821
    %v870 = vmul.f32 %v822, %v822
    %v871 = vmul.f32 %v823, %v823
    %v872 = vmul.f32 %v824, %v824
    %v873 = vmul.f32 %v825, %v825
    %v874 = vmul.f32 %v826, %v826
    %v875 = vsub.f32 %v859, %v867
    %v876 = vsub.f32 %v860, %v868
    %v877 = vsub.f32 %v861, %v869
    %v878 = vsub.f32 %v862, %v870
    %v879 = vsub.f32 %v863, %v871
    %v880 = vsub.f32 %v864, %v872
    %v881 = vsub.f32 %v865, %v873
    %v882 = vsub.f32 %v866, %v874
    %v883 = vsub.f32 %v785, %v819
    %v884 = vsub.f32 %v786, %v820
    %v885 = vsub.f32 %v787, %v821
    %v886 = vsub.f32 %v788, %v822
    %v887 = vsub.f32 %v789, %v823
    %v888 = vsub.f32 %v790, %v824
    %v889 = vsub.f32 %v791, %v825
    %v890 = vsub.f32 %v792, %v826
    %v891 = vadd.f32 %v875, 1e-05
    %v892 = vadd.f32 %v876, 1e-05
    %v893 = vadd.f32 %v877, 1e-05
    %v894 = vadd.f32 %v878, 1e-05
    %v895 = vadd.f32 %v879, 1e-05
    %v896 = vadd.f32 %v880, 1e-05
    %v897 = vadd.f32 %v881, 1e-05
    %v898 = vadd.f32 %v882, 1e-05
    %v899 = vrsqrt.pop %v891
    %v900 = vmul.f32 %v899, %v891
    %v901 = vmul.f32 %v900, %v899
    %v902 = vmul.f32 0.5, %v901
    %v903 = vsub.f32 1.5, %v902
    %v904 = vmul.f32 %v899, %v903
    %vm905 = vweird.f32 %v891
    %vm906 = vweird.f32 %v899
    %vm907 = vmor %vm905, %vm906
    %v908 = vsel %vm907, %v899, %v904
    %v909 = vrsqrt.pop %v892
    %v910 = vmul.f32 %v909, %v892
    %v911 = vmul.f32 %v910, %v909
    %v912 = vmul.f32 0.5, %v911
    %v913 = vsub.f32 1.5, %v912
    %v914 = vmul.f32 %v909, %v913
    %vm915 = vweird.f32 %v892
    %vm916 = vweird.f32 %v909
    %vm917 = vmor %vm915, %vm916
    %v918 = vsel %vm917, %v909, %v914
    %v919 = vrsqrt.pop %v893
    %v920 = vmul.f32 %v919, %v893
    %v921 = vmul.f32 %v920, %v919
    %v922 = vmul.f32 0.5, %v921
    %v923 = vsub.f32 1.5, %v922
    %v924 = vmul.f32 %v919, %v923
    %vm925 = vweird.f32 %v893
    %vm926 = vweird.f32 %v919
    %vm927 = vmor %vm925, %vm926
    %v928 = vsel %vm927, %v919, %v924
    %v929 = vrsqrt.pop %v894
    %v930 = vmul.f32 %v929, %v894
    %v931 = vmul.f32 %v930, %v929
    %v932 = vmul.f32 0.5, %v931
    %v933 = vsub.f32 1.5, %v932
    %v934 = vmul.f32 %v929, %v933
    %vm935 = vweird.f32 %v894
    %vm936 = vweird.f32 %v929
    %vm937 = vmor %vm935, %vm936
    %v938 = vsel %vm937, %v929, %v934
    %v939 = vrsqrt.pop %v895
    %v940 = vmul.f32 %v939, %v895
    %v941 = vmul.f32 %v940, %v939
    %v942 = vmul.f32 0.5, %v941
    %v943 = vsub.f32 1.5, %v942
    %v944 = vmul.f32 %v939, %v943
    %vm945 = vweird.f32 %v895
    %vm946 = vweird.f32 %v939
    %vm947 = vmor %vm945, %vm946
    %v948 = vsel %vm947, %v939, %v944
    %v949 = vrsqrt.pop %v896
    %v950 = vmul.f32 %v949, %v896
    %v951 = vmul.f32 %v950, %v949
    %v952 = vmul.f32 0.5, %v951
    %v953 = vsub.f32 1.5, %v952
    %v954 = vmul.f32 %v949, %v953
    %vm955 = vweird.f32 %v896
    %vm956 = vweird.f32 %v949
    %vm957 = vmor %vm955, %vm956
    %v958 = vsel %vm957, %v949, %v954
    %v959 = vrsqrt.pop %v897
    %v960 = vmul.f32 %v959, %v897
    %v961 = vmul.f32 %v960, %v959
    %v962 = vmul.f32 0.5, %v961
    %v963 = vsub.f32 1.5, %v962
    %v964 = vmul.f32 %v959, %v963
    %vm965 = vweird.f32 %v897
    %vm966 = vweird.f32 %v959
    %vm967 = vmor %vm965, %vm966
    %v968 = vsel %vm967, %v959, %v964
    %v969 = vrsqrt.pop %v898
    %v970 = vmul.f32 %v969, %v898
    %v971 = vmul.f32 %v970, %v969
    %v972 = vmul.f32 0.5, %v971
    %v973 = vsub.f32 1.5, %v972
    %v974 = vmul.f32 %v969, %v973
    %vm975 = vweird.f32 %v898
    %vm976 = vweird.f32 %v969
    %vm977 = vmor %vm975, %vm976
    %v978 = vsel %vm977, %v969, %v974
    %v979 = vmul.f32 %v883, %v908
    %v980 = vmul.f32 %v884, %v918
    %v981 = vmul.f32 %v885, %v928
    %v982 = vmul.f32 %v886, %v938
    %v983 = vmul.f32 %v887, %v948
    %v984 = vmul.f32 %v888, %v958
    %v985 = vmul.f32 %v889, %v968
    %v986 = vmul.f32 %v890, %v978
    %v988 = vperm.slane %v793, 0
    %v990 = vmul.f32 %v979, %v988
    %v991 = vmul.f32 %v980, %v988
    %v992 = vmul.f32 %v981, %v988
    %v993 = vmul.f32 %v982, %v988
    %v994 = vmul.f32 %v983, %v988
    %v995 = vmul.f32 %v984, %v988
    %v996 = vmul.f32 %v985, %v988
    %v997 = vmul.f32 %v986, %v988
    %v999 = vperm.slane %v794, 0
    %v1001 = vadd.f32 %v990, %v999
    %v1002 = vadd.f32 %v991, %v999
    %v1003 = vadd.f32 %v992, %v999
    %v1004 = vadd.f32 %v993, %v999
    %v1005 = vadd.f32 %v994, %v999
    %v1006 = vadd.f32 %v995, %v999
    %v1007 = vadd.f32 %v996, %v999
    %v1008 = vadd.f32 %v997, %v999
    %v1009 = vld [vmem:[#allocation13] sm:$0xff]
    %v1010 = vld [vmem:[#allocation13 + $0x8] sm:$0xff]
    %v1011 = vld [vmem:[#allocation13 + $0x10] sm:$0xff]
    %v1012 = vld [vmem:[#allocation13 + $0x18] sm:$0xff]
    %v1013 = vld [vmem:[%s13] sm:$0x1]
    %v1015 = vperm.slane %v1013, 0
    %v1018 = vsel %vm208, %v1001, 0
    %v1021 = vsel %vm208, %v1002, 0
    %v1024 = vsel %vm208, %v1003, 0
    %v1027 = vsel %vm208, %v1004, 0
    %v1030 = vsel %vm208, %v1005, 0
    %v1033 = vsel %vm208, %v1006, 0
    %v1036 = vsel %vm208, %v1007, 0
    %v1039 = vsel %vm208, %v1008, 0
    %1041 = vmatpush.msra.mxu0 0.0
    %1042 = vmatpush.msra.mxu0 0.0
    %1043 = vmatpush.msra.mxu0 0.0
    %1044 = vmatpush.msra.mxu0 0.0
    %1045 = vmatpush.msra.mxu0 0.0
    %1046 = vmatpush.msra.mxu0 0.0
    %1047 = vmatpush.msra.mxu0 0.0
    %1048 = vmatpush.msra.mxu0 0.0
    %1049 = vmatpush.msra.mxu0 0.0
    %1050 = vmatpush.msra.mxu0 0.0
    %1051 = vmatpush.msra.mxu0 0.0
    %1052 = vmatpush.msra.mxu0 0.0
    %1053 = vmatpush.msra.mxu0 %v1012
    %1054 = vmatpush.msra.mxu0 %v1011
    %1055 = vmatpush.msra.mxu0 %v1010
    %1056 = vmatpush.msra.mxu0 %v1009
    %1057 = vmatmul.f32.gmra.mxu0 %v1018
    %v1058 = vpop.f32.mrf.mxu0
    %v1059 = vadd.f32 %v1015, %v1058
    %1060 = vmatmul.f32.gmra.mxu0 %v1021
    %v1061 = vpop.f32.mrf.mxu0
    %v1062 = vadd.f32 %v1015, %v1061
    %1063 = vmatmul.f32.gmra.mxu0 %v1024
    %v1064 = vpop.f32.mrf.mxu0
    %v1065 = vadd.f32 %v1015, %v1064
    %1066 = vmatmul.f32.gmra.mxu0 %v1027
    %v1067 = vpop.f32.mrf.mxu0
    %v1068 = vadd.f32 %v1015, %v1067
    %1069 = vmatmul.f32.gmra.mxu0 %v1030
    %v1070 = vpop.f32.mrf.mxu0
    %v1071 = vadd.f32 %v1015, %v1070
    %1072 = vmatmul.f32.gmra.mxu0 %v1033
    %v1073 = vpop.f32.mrf.mxu0
    %v1074 = vadd.f32 %v1015, %v1073
    %1075 = vmatmul.f32.gmra.mxu0 %v1036
    %v1076 = vpop.f32.mrf.mxu0
    %v1077 = vadd.f32 %v1015, %v1076
    %1078 = vmatmul.f32.gmra.mxu0 %v1039
    %v1079 = vpop.f32.mrf.mxu0
    %v1080 = vadd.f32 %v1015, %v1079
    %1081 = vdwg.mxu0
    %v1082 = vld [vmem:[#allocation14] sm:$0xff]
    %v1083 = vld [vmem:[#allocation14 + $0x8] sm:$0xff]
    %v1084 = vld [vmem:[#allocation14 + $0x10] sm:$0xff]
    %v1085 = vld [vmem:[#allocation14 + $0x18] sm:$0xff]
    %v1086 = vld [vmem:[%s15] sm:$0x1]
    %v1088 = vperm.slane %v1086, 0
    %1090 = vmatpush.msra.mxu0 0.0
    %1091 = vmatpush.msra.mxu0 0.0
    %1092 = vmatpush.msra.mxu0 0.0
    %1093 = vmatpush.msra.mxu0 0.0
    %1094 = vmatpush.msra.mxu0 0.0
    %1095 = vmatpush.msra.mxu0 0.0
    %1096 = vmatpush.msra.mxu0 0.0
    %1097 = vmatpush.msra.mxu0 0.0
    %1098 = vmatpush.msra.mxu0 0.0
    %1099 = vmatpush.msra.mxu0 0.0
    %1100 = vmatpush.msra.mxu0 0.0
    %1101 = vmatpush.msra.mxu0 0.0
    %1102 = vmatpush.msra.mxu0 %v1085
    %1103 = vmatpush.msra.mxu0 %v1084
    %1104 = vmatpush.msra.mxu0 %v1083
    %1105 = vmatpush.msra.mxu0 %v1082
    %1106 = vmatmul.f32.gmra.mxu0 %v1018
    %v1107 = vpop.f32.mrf.mxu0
    %v1108 = vadd.f32 %v1088, %v1107
    %1109 = vmatmul.f32.gmra.mxu0 %v1021
    %v1110 = vpop.f32.mrf.mxu0
    %v1111 = vadd.f32 %v1088, %v1110
    %1112 = vmatmul.f32.gmra.mxu0 %v1024
    %v1113 = vpop.f32.mrf.mxu0
    %v1114 = vadd.f32 %v1088, %v1113
    %1115 = vmatmul.f32.gmra.mxu0 %v1027
    %v1116 = vpop.f32.mrf.mxu0
    %v1117 = vadd.f32 %v1088, %v1116
    %1118 = vmatmul.f32.gmra.mxu0 %v1030
    %v1119 = vpop.f32.mrf.mxu0
    %v1120 = vadd.f32 %v1088, %v1119
    %1121 = vmatmul.f32.gmra.mxu0 %v1033
    %v1122 = vpop.f32.mrf.mxu0
    %v1123 = vadd.f32 %v1088, %v1122
    %1124 = vmatmul.f32.gmra.mxu0 %v1036
    %v1125 = vpop.f32.mrf.mxu0
    %v1126 = vadd.f32 %v1088, %v1125
    %1127 = vmatmul.f32.gmra.mxu0 %v1039
    %v1128 = vpop.f32.mrf.mxu0
    %v1129 = vadd.f32 %v1088, %v1128
    %1130 = vdwg.mxu0
    %v1131 = vmax.f32 %v1108, 0.0
    %v1132 = vmax.f32 %v1111, 0.0
    %v1133 = vmax.f32 %v1114, 0.0
    %v1134 = vmax.f32 %v1117, 0.0
    %v1135 = vmax.f32 %v1120, 0.0
    %v1136 = vmax.f32 %v1123, 0.0
    %v1137 = vmax.f32 %v1126, 0.0
    %v1138 = vmax.f32 %v1129, 0.0
    %v1139 = vmul.f32 %v1059, %v1131
    %v1140 = vmul.f32 %v1062, %v1132
    %v1141 = vmul.f32 %v1065, %v1133
    %v1142 = vmul.f32 %v1068, %v1134
    %v1143 = vmul.f32 %v1071, %v1135
    %v1144 = vmul.f32 %v1074, %v1136
    %v1145 = vmul.f32 %v1077, %v1137
    %v1146 = vmul.f32 %v1080, %v1138
    %v1147 = vld [vmem:[#allocation16] sm:$0xff]
    %v1148 = vld [vmem:[#allocation16 + $0x8] sm:$0xff]
    %v1149 = vld [vmem:[#allocation16 + $0x10] sm:$0xff]
    %v1150 = vld [vmem:[#allocation16 + $0x18] sm:$0xff]
    %v1151 = vld [vmem:[%s17] sm:$0x1]
    %v1153 = vperm.slane %v1151, 0
    %v1156 = vsel %vm208, %v1139, 0
    %v1159 = vsel %vm208, %v1140, 0
    %v1162 = vsel %vm208, %v1141, 0
    %v1165 = vsel %vm208, %v1142, 0
    %v1168 = vsel %vm208, %v1143, 0
    %v1171 = vsel %vm208, %v1144, 0
    %v1174 = vsel %vm208, %v1145, 0
    %v1177 = vsel %vm208, %v1146, 0
    %1179 = vmatpush.msra.mxu0 0.0
    %1180 = vmatpush.msra.mxu0 0.0
    %1181 = vmatpush.msra.mxu0 0.0
    %1182 = vmatpush.msra.mxu0 0.0
    %1183 = vmatpush.msra.mxu0 0.0
    %1184 = vmatpush.msra.mxu0 0.0
    %1185 = vmatpush.msra.mxu0 0.0
    %1186 = vmatpush.msra.mxu0 0.0
    %1187 = vmatpush.msra.mxu0 0.0
    %1188 = vmatpush.msra.mxu0 0.0
    %1189 = vmatpush.msra.mxu0 0.0
    %1190 = vmatpush.msra.mxu0 0.0
    %1191 = vmatpush.msra.mxu0 %v1150
    %1192 = vmatpush.msra.mxu0 %v1149
    %1193 = vmatpush.msra.mxu0 %v1148
    %1194 = vmatpush.msra.mxu0 %v1147
    %1195 = vmatmul.f32.gmra.mxu0 %v1156
    %v1196 = vpop.f32.mrf.mxu0
    %v1197 = vadd.f32 %v1153, %v1196
    %1198 = vmatmul.f32.gmra.mxu0 %v1159
    %v1199 = vpop.f32.mrf.mxu0
    %v1200 = vadd.f32 %v1153, %v1199
    %1201 = vmatmul.f32.gmra.mxu0 %v1162
    %v1202 = vpop.f32.mrf.mxu0
    %v1203 = vadd.f32 %v1153, %v1202
    %1204 = vmatmul.f32.gmra.mxu0 %v1165
    %v1205 = vpop.f32.mrf.mxu0
    %v1206 = vadd.f32 %v1153, %v1205
    %1207 = vmatmul.f32.gmra.mxu0 %v1168
    %v1208 = vpop.f32.mrf.mxu0
    %v1209 = vadd.f32 %v1153, %v1208
    %1210 = vmatmul.f32.gmra.mxu0 %v1171
    %v1211 = vpop.f32.mrf.mxu0
    %v1212 = vadd.f32 %v1153, %v1211
    %1213 = vmatmul.f32.gmra.mxu0 %v1174
    %v1214 = vpop.f32.mrf.mxu0
    %v1215 = vadd.f32 %v1153, %v1214
    %1216 = vmatmul.f32.gmra.mxu0 %v1177
    %v1217 = vpop.f32.mrf.mxu0
    %v1218 = vadd.f32 %v1153, %v1217
    %1219 = vdwg.mxu0
    %v1220 = vadd.f32 %v785, %v1197
    %v1221 = vadd.f32 %v786, %v1200
    %v1222 = vadd.f32 %v787, %v1203
    %v1223 = vadd.f32 %v788, %v1206
    %v1224 = vadd.f32 %v789, %v1209
    %v1225 = vadd.f32 %v790, %v1212
    %v1226 = vadd.f32 %v791, %v1215
    %v1227 = vadd.f32 %v792, %v1218
    %1228 = vst.msk [vmem:[#allocation17] sm:$0xff] %vm208, %v1220
    %1229 = vst.msk [vmem:[#allocation17 + $0x8] sm:$0xff] %vm208, %v1221
    %1230 = vst.msk [vmem:[#allocation17 + $0x10] sm:$0xff] %vm208, %v1222
    %1231 = vst.msk [vmem:[#allocation17 + $0x18] sm:$0xff] %vm208, %v1223
    %1232 = vst.msk [vmem:[#allocation17 + $0x20] sm:$0xff] %vm208, %v1224
    %1233 = vst.msk [vmem:[#allocation17 + $0x28] sm:$0xff] %vm208, %v1225
    %1234 = vst.msk [vmem:[#allocation17 + $0x30] sm:$0xff] %vm208, %v1226
    %1235 = vst.msk [vmem:[#allocation17 + $0x38] sm:$0xff] %vm208, %v1227
    // Predicated region
    $region110: #{tpu_custom_call.1} parent=1 // pred_check
      _
    $region111: #{tpu_custom_call.1} parent=1 // pred_check_branch
      %1237 = sbr.rel (0) target = $region113
    $region112: #{tpu_custom_call.1} parent=1 // pred_region
      %1239 = vsyncadd [#allocation4], 0
      %s1240 = sshll.u32 [#allocation17], 4
      %s1241 = int_to_ptr.vmem [resolvable:$true] %s1240
      %s1242 = sshll.u32 %s18, 4
      %s1243 = int_to_ptr.hbm [resolvable:$true] %s1242
      %1248 = dma.vmem_to_hbm [thread:$0]  %s1241, 1024, %s1243, [#allocation4], 128, 128, 8
    $region113: #{tpu_custom_call.1} parent=1 // pred_fallthru
      _
    // Predicated region
    $region114: #{tpu_custom_call.1} parent=1 // pred_check
      _
    $region115: #{tpu_custom_call.1} parent=1 // pred_check_branch
      %1250 = sbr.rel (0) target = $region117
    $region116: #{tpu_custom_call.1} parent=1 // pred_region
      %1252 = dma.done [#allocation4], 1024
    $region117: #{tpu_custom_call.1} parent=1 // pred_fallthru
      _
    %1253 = vsyncpa [#allocation3], 1
    %1254 = vsyncpa [#allocation6], 1
    %1255 = vsyncpa [#allocation9], 1
    %1256 = vsyncpa [#allocation12], 1
    %1257 = vsyncpa [#allocation15], 1
    %1258 = vsyncpa [#allocation4], 1

</llo_original>
